<compile_context>
chip_gen: v5e
topology: v5e:2x2
jax: 0.10.0
libtpu: 0.0.40
codegen_flags: <defaults>
</compile_context>

<pallas_src>
import functools

import jax
import jax.numpy as jnp
from jax.experimental import pallas as pl
from jax.experimental.pallas import tpu as pltpu


# ------------------------------ fused model kernel ----------------------------
def _rnn_kernel(*refs, n_rest, T, B):
    """Whole model in one kernel.

    Inputs (when n_rest > 0):
      xp0_ref : (T*B, 4H) f32   layer-0 gate pre-activations (x@W_ih0 + b0)
      whh0_ref: (H, 4H)  bf16   layer-0 recurrent weights, packed [i,f,g,o]
      wih_r/whh_r: (L-1, H, 4H) bf16 stacked packed weights for layers 1..L-1
      b_r     : (L-1, 1, 4H) f32
      fcw_ref : (H, O) f32, fcb_ref: (1, O) f32
    Output:
      o_ref   : (B, O) f32
    Scratch:
      xproj_sc: (T*B, 4H) f32   gate pre-activations of the current layer
      hseq_sc : (T*B, H)  f32   hidden sequence of the current (non-final) layer
    """
    if n_rest:
        (xp0_ref, whh0_ref, wih_r_ref, whh_r_ref, b_r_ref,
         fcw_ref, fcb_ref, o_ref, xproj_sc, hseq_sc) = refs
    else:
        (xp0_ref, whh0_ref, fcw_ref, fcb_ref, o_ref,
         xproj_sc, hseq_sc) = refs
        wih_r_ref = whh_r_ref = b_r_ref = None

    G = xp0_ref.shape[-1]
    H = G // 4

    def recur(whh_bf16, xp_ref, store_hseq):
        """Serial time recurrence.  Input projection already computed for all
        timesteps (off the serial chain); each step is one packed
        (B,H)x(H,4H) bf16 matmul (f32 accumulate) + f32 gate elementwise."""
        h = None
        c = None
        for t in range(T):                      # static unroll, T is small
            rows = pl.ds(t * B, B)
            gates = xp_ref[rows, :]             # (B, 4H) f32
            if h is not None:                   # h0 == 0 -> skip first matmul
                gates = gates + jnp.dot(h.astype(jnp.bfloat16), whh_bf16,
                                        preferred_element_type=jnp.float32)
            # Two full-vreg EUP pushes cover all four packed gates.
            sg = jax.nn.sigmoid(gates)
            tg = jnp.tanh(gates)
            i_g = sg[:, 0 * H:1 * H]
            f_g = sg[:, 1 * H:2 * H]
            g_g = tg[:, 2 * H:3 * H]
            o_g = sg[:, 3 * H:4 * H]
            c = i_g * g_g if c is None else f_g * c + i_g * g_g   # f32 cell
            h = o_g * jnp.tanh(c)
            if store_hseq:                      # skipped for the final layer
                hseq_sc[rows, :] = h
        return h

    # ---- layer 0: input projection hoisted into the wrapper ------------------
    h_last = recur(whh0_ref[...], xp0_ref, store_hseq=n_rest > 0)

    # ---- layers 1..L-1 (static Python loop; L is a compile-time constant) ----
    for l in range(n_rest):
        # One batched (T*B,H)@(H,4H) projection per layer, bias added once.
        xproj_sc[...] = (jnp.dot(hseq_sc[...].astype(jnp.bfloat16),
                                 wih_r_ref[l],
                                 preferred_element_type=jnp.float32)
                         + b_r_ref[l])
        h_last = recur(whh_r_ref[l], xproj_sc, store_hseq=l < n_rest - 1)

    # ---- FC head on the last timestep's hidden state (fused, f32) ------------
    o_ref[...] = (jnp.dot(h_last, fcw_ref[...],
                          preferred_element_type=jnp.float32) + fcb_ref[...])


# ----------------------------------- wrapper ----------------------------------
def rnn_forward(params, x_btd):
    """Equivalent of RNN.forward: x_btd is (B, T, input_dim), batch_first."""
    x = jnp.transpose(x_btd, (1, 0, 2)).astype(jnp.float32)      # (T, B, D)
    T, B, D = x.shape
    wih0, whh0, b0 = params["lstm"][0]
    H = whh0.shape[0]
    G = 4 * H

    # Hoisted layer-0 input projection: one (T*B, D) @ (D, 4H) matmul,
    # bf16 operands + f32 accumulate (review: drop Precision.HIGHEST).
    xp0 = (jnp.dot(x.reshape(T * B, D).astype(jnp.bfloat16),
                   wih0.astype(jnp.bfloat16),
                   preferred_element_type=jnp.float32) + b0)     # (T*B, 4H) f32

    rest = params["lstm"][1:]
    n_rest = len(rest)
    operands = [xp0, whh0.astype(jnp.bfloat16)]
    if n_rest:
        operands += [
            jnp.stack([w for (w, _, _) in rest]).astype(jnp.bfloat16),
            jnp.stack([w for (_, w, _) in rest]).astype(jnp.bfloat16),
            jnp.stack([b for (_, _, b) in rest]),                # f32 biases
        ]
    fc_w, fc_b = params["fc_w"], params["fc_b"]
    operands += [fc_w, fc_b]
    O = fc_w.shape[-1]

    kernel = functools.partial(_rnn_kernel, n_rest=n_rest, T=T, B=B)
    return pl.pallas_call(
        kernel,
        out_shape=jax.ShapeDtypeStruct((B, O), jnp.float32),
        scratch_shapes=[
            pltpu.VMEM((T * B, G), jnp.float32),   # packed gate pre-activations
            pltpu.VMEM((T * B, H), jnp.float32),   # current layer hidden seq
        ],
    )(*operands)


# ------------------------------ params / reference ----------------------------
def init_params(key, input_dim, hidden_dim, layer_dim, output_dim):
    """Deterministic init mimicking PyTorch U(-1/sqrt(H), 1/sqrt(H)),
    with gate-fused packed layout: W_ih (D_in, 4H), W_hh (H, 4H), b (1, 4H)."""
    params = {"lstm": []}
    k = 1.0 / float(hidden_dim) ** 0.5
    for layer in range(layer_dim):
        d_in = input_dim if layer == 0 else hidden_dim
        key, k1, k2, k3, k4 = jax.random.split(key, 5)
        w_ih = jax.random.uniform(k1, (d_in, 4 * hidden_dim), jnp.float32, -k, k)
        w_hh = jax.random.uniform(k2, (hidden_dim, 4 * hidden_dim), jnp.float32, -k, k)
        b_ih = jax.random.uniform(k3, (1, 4 * hidden_dim), jnp.float32, -k, k)
        b_hh = jax.random.uniform(k4, (1, 4 * hidden_dim), jnp.float32, -k, k)
        params["lstm"].append((w_ih, w_hh, b_ih + b_hh))
    key, k5, k6 = jax.random.split(key, 3)
    params["fc_w"] = jax.random.uniform(k5, (hidden_dim, output_dim),
                                        jnp.float32, -k, k)
    params["fc_b"] = jax.random.uniform(k6, (1, output_dim), jnp.float32, -k, k)
    return params


def rnn_reference(params, x_btd):
    """Pure-JAX f32 reference (same math, same packed layout, HIGHEST precision)."""
    hp = jax.lax.Precision.HIGHEST
    x = jnp.transpose(x_btd, (1, 0, 2)).astype(jnp.float32)      # (T, B, D)
    T, B, _ = x.shape
    for (w_ih, w_hh, b) in params["lstm"]:
        H = w_hh.shape[0]
        h = jnp.zeros((B, H), jnp.float32)
        c = jnp.zeros((B, H), jnp.float32)
        outs = []
        for t in range(T):
            g = (jnp.dot(x[t], w_ih, precision=hp)
                 + jnp.dot(h, w_hh, precision=hp) + b)
            i = jax.nn.sigmoid(g[:, 0:H])
            f = jax.nn.sigmoid(g[:, H:2 * H])
            gg = jnp.tanh(g[:, 2 * H:3 * H])
            o = jax.nn.sigmoid(g[:, 3 * H:4 * H])
            c = f * c + i * gg
            h = o * jnp.tanh(c)
            outs.append(h)
        x = jnp.stack(outs, axis=0)
    return jnp.dot(x[-1], params["fc_w"], precision=hp) + params["fc_b"]


# ------------------------------------ main -------------------------------------
if __name__ == "__main__":
    # batch=2, seq=8, input_dim=16, hidden_dim=32, layer_dim=2, output_dim=10
    B, T, D, H, L, O = 2, 8, 16, 32, 2, 10

    key = jax.random.PRNGKey(0)
    key, xkey = jax.random.split(key)
    x = jax.random.normal(xkey, (B, T, D), dtype=jnp.float32)
    params = init_params(key, D, H, L, O)

    out = jax.block_until_ready(rnn_forward(params, x))
    assert out.shape == (B, O), out.shape

    ref = jax.block_until_ready(rnn_reference(params, x))
    err = float(jnp.max(jnp.abs(out - ref)))
    # Tolerance reflects bf16 MXU operands (f32 accumulate) vs. the pure-f32
    # HIGHEST-precision reference; cell/gate elementwise math stays f32.
    assert jnp.allclose(out, ref, atol=2e-2, rtol=2e-2), f"max abs err {err}"

    print("KERNEL_OK")
</pallas_src>

<mosaic_0001>
module attributes {stable_mosaic.version = 11 : i64} {
  func.func @_rnn_kernel(%arg0: memref<16x128xf32, #tpu.memory_space<vmem>>, %arg1: memref<32x128xbf16, #tpu.memory_space<vmem>>, %arg2: memref<1x32x128xbf16, #tpu.memory_space<vmem>>, %arg3: memref<1x32x128xbf16, #tpu.memory_space<vmem>>, %arg4: memref<1x1x128xf32, #tpu.memory_space<vmem>>, %arg5: memref<32x10xf32, #tpu.memory_space<vmem>>, %arg6: memref<1x10xf32, #tpu.memory_space<vmem>>, %arg7: memref<2x10xf32, #tpu.memory_space<vmem>>, %arg8: memref<16x128xf32, #tpu.memory_space<vmem>>, %arg9: memref<16x32xf32, #tpu.memory_space<vmem>>) attributes {dimension_semantics = [], scalar_prefetch = 0 : i64, scratch_operands = 2 : i64, tpu.core_type = #tpu.core_type<tc>} {
    %c0 = arith.constant 0 : index
    %c0_0 = arith.constant 0 : index
    %0 = vector.load %arg1[%c0, %c0_0] : memref<32x128xbf16, #tpu.memory_space<vmem>>, vector<32x128xbf16>
    %c0_1 = arith.constant 0 : index
    %c0_2 = arith.constant 0 : index
    %1 = vector.load %arg0[%c0_1, %c0_2] : memref<16x128xf32, #tpu.memory_space<vmem>>, vector<2x128xf32>
    %2 = arith.negf %1 : vector<2x128xf32>
    %3 = math.exp %2 : vector<2x128xf32>
    %cst = arith.constant 1.000000e+00 : f32
    %4 = vector.broadcast %cst : f32 to vector<2x128xf32>
    %5 = arith.addf %4, %3 : vector<2x128xf32>
    %6 = arith.divf %4, %5 : vector<2x128xf32>
    %7 = math.tanh %1 : vector<2x128xf32>
    %8 = vector.extract_strided_slice %6 {offsets = [0, 0], sizes = [2, 32], strides = [1, 1]} : vector<2x128xf32> to vector<2x32xf32>
    %9 = vector.extract_strided_slice %7 {offsets = [0, 64], sizes = [2, 32], strides = [1, 1]} : vector<2x128xf32> to vector<2x32xf32>
    %10 = vector.extract_strided_slice %6 {offsets = [0, 96], sizes = [2, 32], strides = [1, 1]} : vector<2x128xf32> to vector<2x32xf32>
    %11 = arith.mulf %8, %9 : vector<2x32xf32>
    %12 = math.tanh %11 : vector<2x32xf32>
    %13 = arith.mulf %10, %12 : vector<2x32xf32>
    %c0_3 = arith.constant 0 : index
    %c0_4 = arith.constant 0 : index
    %14 = vector.load %arg9[%c0_3, %c0_4] : memref<16x32xf32, #tpu.memory_space<vmem>>, vector<2x32xf32>
    tpu.vector_store %arg9[%c0_3, %c0_4], %13 {strides = array<i32>} : memref<16x32xf32, #tpu.memory_space<vmem>>, vector<2x32xf32>,
    %c2 = arith.constant 2 : index
    %c0_5 = arith.constant 0 : index
    %15 = vector.load %arg0[%c2, %c0_5] : memref<16x128xf32, #tpu.memory_space<vmem>>, vector<2x128xf32>
    %16 = arith.truncf %13 : vector<2x32xf32> to vector<2x32xbf16>
    %cst_6 = arith.constant dense<0.000000e+00> : vector<2x128xf32>
    %17 = tpu.matmul %16, %0, %cst_6 {dimension_numbers = #tpu.dot_dimension_numbers<[1], [0], [0], [1], [0, 0, 1, 1], [], []>} : vector<2x32xbf16>, vector<32x128xbf16>, vector<2x128xf32> -> vector<2x128xf32>
    %18 = arith.addf %15, %17 : vector<2x128xf32>
    %19 = arith.negf %18 : vector<2x128xf32>
    %20 = math.exp %19 : vector<2x128xf32>
    %cst_7 = arith.constant 1.000000e+00 : f32
    %21 = vector.broadcast %cst_7 : f32 to vector<2x128xf32>
    %22 = arith.addf %21, %20 : vector<2x128xf32>
    %23 = arith.divf %21, %22 : vector<2x128xf32>
    %24 = math.tanh %18 : vector<2x128xf32>
    %25 = vector.extract_strided_slice %23 {offsets = [0, 0], sizes = [2, 32], strides = [1, 1]} : vector<2x128xf32> to vector<2x32xf32>
    %26 = vector.extract_strided_slice %23 {offsets = [0, 32], sizes = [2, 32], strides = [1, 1]} : vector<2x128xf32> to vector<2x32xf32>
    %27 = vector.extract_strided_slice %24 {offsets = [0, 64], sizes = [2, 32], strides = [1, 1]} : vector<2x128xf32> to vector<2x32xf32>
    %28 = vector.extract_strided_slice %23 {offsets = [0, 96], sizes = [2, 32], strides = [1, 1]} : vector<2x128xf32> to vector<2x32xf32>
    %29 = arith.mulf %26, %11 : vector<2x32xf32>
    %30 = arith.mulf %25, %27 : vector<2x32xf32>
    %31 = arith.addf %29, %30 : vector<2x32xf32>
    %32 = math.tanh %31 : vector<2x32xf32>
    %33 = arith.mulf %28, %32 : vector<2x32xf32>
    %c2_8 = arith.constant 2 : index
    %c0_9 = arith.constant 0 : index
    %34 = vector.load %arg9[%c2_8, %c0_9] : memref<16x32xf32, #tpu.memory_space<vmem>>, vector<2x32xf32>
    tpu.vector_store %arg9[%c2_8, %c0_9], %33 {strides = array<i32>} : memref<16x32xf32, #tpu.memory_space<vmem>>, vector<2x32xf32>,
    %c4 = arith.constant 4 : index
    %c0_10 = arith.constant 0 : index
    %35 = vector.load %arg0[%c4, %c0_10] : memref<16x128xf32, #tpu.memory_space<vmem>>, vector<2x128xf32>
    %36 = arith.truncf %33 : vector<2x32xf32> to vector<2x32xbf16>
    %cst_11 = arith.constant dense<0.000000e+00> : vector<2x128xf32>
    %37 = tpu.matmul %36, %0, %cst_11 {dimension_numbers = #tpu.dot_dimension_numbers<[1], [0], [0], [1], [0, 0, 1, 1], [], []>} : vector<2x32xbf16>, vector<32x128xbf16>, vector<2x128xf32> -> vector<2x128xf32>
    %38 = arith.addf %35, %37 : vector<2x128xf32>
    %39 = arith.negf %38 : vector<2x128xf32>
    %40 = math.exp %39 : vector<2x128xf32>
    %cst_12 = arith.constant 1.000000e+00 : f32
    %41 = vector.broadcast %cst_12 : f32 to vector<2x128xf32>
    %42 = arith.addf %41, %40 : vector<2x128xf32>
    %43 = arith.divf %41, %42 : vector<2x128xf32>
    %44 = math.tanh %38 : vector<2x128xf32>
    %45 = vector.extract_strided_slice %43 {offsets = [0, 0], sizes = [2, 32], strides = [1, 1]} : vector<2x128xf32> to vector<2x32xf32>
    %46 = vector.extract_strided_slice %43 {offsets = [0, 32], sizes = [2, 32], strides = [1, 1]} : vector<2x128xf32> to vector<2x32xf32>
    %47 = vector.extract_strided_slice %44 {offsets = [0, 64], sizes = [2, 32], strides = [1, 1]} : vector<2x128xf32> to vector<2x32xf32>
    %48 = vector.extract_strided_slice %43 {offsets = [0, 96], sizes = [2, 32], strides = [1, 1]} : vector<2x128xf32> to vector<2x32xf32>
    %49 = arith.mulf %46, %31 : vector<2x32xf32>
    %50 = arith.mulf %45, %47 : vector<2x32xf32>
    %51 = arith.addf %49, %50 : vector<2x32xf32>
    %52 = math.tanh %51 : vector<2x32xf32>
    %53 = arith.mulf %48, %52 : vector<2x32xf32>
    %c4_13 = arith.constant 4 : index
    %c0_14 = arith.constant 0 : index
    %54 = vector.load %arg9[%c4_13, %c0_14] : memref<16x32xf32, #tpu.memory_space<vmem>>, vector<2x32xf32>
    tpu.vector_store %arg9[%c4_13, %c0_14], %53 {strides = array<i32>} : memref<16x32xf32, #tpu.memory_space<vmem>>, vector<2x32xf32>,
    %c6 = arith.constant 6 : index
    %c0_15 = arith.constant 0 : index
    %55 = vector.load %arg0[%c6, %c0_15] : memref<16x128xf32, #tpu.memory_space<vmem>>, vector<2x128xf32>
    %56 = arith.truncf %53 : vector<2x32xf32> to vector<2x32xbf16>
    %cst_16 = arith.constant dense<0.000000e+00> : vector<2x128xf32>
    %57 = tpu.matmul %56, %0, %cst_16 {dimension_numbers = #tpu.dot_dimension_numbers<[1], [0], [0], [1], [0, 0, 1, 1], [], []>} : vector<2x32xbf16>, vector<32x128xbf16>, vector<2x128xf32> -> vector<2x128xf32>
    %58 = arith.addf %55, %57 : vector<2x128xf32>
    %59 = arith.negf %58 : vector<2x128xf32>
    %60 = math.exp %59 : vector<2x128xf32>
    %cst_17 = arith.constant 1.000000e+00 : f32
    %61 = vector.broadcast %cst_17 : f32 to vector<2x128xf32>
    %62 = arith.addf %61, %60 : vector<2x128xf32>
    %63 = arith.divf %61, %62 : vector<2x128xf32>
    %64 = math.tanh %58 : vector<2x128xf32>
    %65 = vector.extract_strided_slice %63 {offsets = [0, 0], sizes = [2, 32], strides = [1, 1]} : vector<2x128xf32> to vector<2x32xf32>
    %66 = vector.extract_strided_slice %63 {offsets = [0, 32], sizes = [2, 32], strides = [1, 1]} : vector<2x128xf32> to vector<2x32xf32>
    %67 = vector.extract_strided_slice %64 {offsets = [0, 64], sizes = [2, 32], strides = [1, 1]} : vector<2x128xf32> to vector<2x32xf32>
    %68 = vector.extract_strided_slice %63 {offsets = [0, 96], sizes = [2, 32], strides = [1, 1]} : vector<2x128xf32> to vector<2x32xf32>
    %69 = arith.mulf %66, %51 : vector<2x32xf32>
    %70 = arith.mulf %65, %67 : vector<2x32xf32>
    %71 = arith.addf %69, %70 : vector<2x32xf32>
    %72 = math.tanh %71 : vector<2x32xf32>
    %73 = arith.mulf %68, %72 : vector<2x32xf32>
    %c6_18 = arith.constant 6 : index
    %c0_19 = arith.constant 0 : index
    %74 = vector.load %arg9[%c6_18, %c0_19] : memref<16x32xf32, #tpu.memory_space<vmem>>, vector<2x32xf32>
    tpu.vector_store %arg9[%c6_18, %c0_19], %73 {strides = array<i32>} : memref<16x32xf32, #tpu.memory_space<vmem>>, vector<2x32xf32>,
    %c8 = arith.constant 8 : index
    %c0_20 = arith.constant 0 : index
    %75 = vector.load %arg0[%c8, %c0_20] : memref<16x128xf32, #tpu.memory_space<vmem>>, vector<2x128xf32>
    %76 = arith.truncf %73 : vector<2x32xf32> to vector<2x32xbf16>
    %cst_21 = arith.constant dense<0.000000e+00> : vector<2x128xf32>
    %77 = tpu.matmul %76, %0, %cst_21 {dimension_numbers = #tpu.dot_dimension_numbers<[1], [0], [0], [1], [0, 0, 1, 1], [], []>} : vector<2x32xbf16>, vector<32x128xbf16>, vector<2x128xf32> -> vector<2x128xf32>
    %78 = arith.addf %75, %77 : vector<2x128xf32>
    %79 = arith.negf %78 : vector<2x128xf32>
    %80 = math.exp %79 : vector<2x128xf32>
    %cst_22 = arith.constant 1.000000e+00 : f32
    %81 = vector.broadcast %cst_22 : f32 to vector<2x128xf32>
    %82 = arith.addf %81, %80 : vector<2x128xf32>
    %83 = arith.divf %81, %82 : vector<2x128xf32>
    %84 = math.tanh %78 : vector<2x128xf32>
    %85 = vector.extract_strided_slice %83 {offsets = [0, 0], sizes = [2, 32], strides = [1, 1]} : vector<2x128xf32> to vector<2x32xf32>
    %86 = vector.extract_strided_slice %83 {offsets = [0, 32], sizes = [2, 32], strides = [1, 1]} : vector<2x128xf32> to vector<2x32xf32>
    %87 = vector.extract_strided_slice %84 {offsets = [0, 64], sizes = [2, 32], strides = [1, 1]} : vector<2x128xf32> to vector<2x32xf32>
    %88 = vector.extract_strided_slice %83 {offsets = [0, 96], sizes = [2, 32], strides = [1, 1]} : vector<2x128xf32> to vector<2x32xf32>
    %89 = arith.mulf %86, %71 : vector<2x32xf32>
    %90 = arith.mulf %85, %87 : vector<2x32xf32>
    %91 = arith.addf %89, %90 : vector<2x32xf32>
    %92 = math.tanh %91 : vector<2x32xf32>
    %93 = arith.mulf %88, %92 : vector<2x32xf32>
    %c8_23 = arith.constant 8 : index
    %c0_24 = arith.constant 0 : index
    %94 = vector.load %arg9[%c8_23, %c0_24] : memref<16x32xf32, #tpu.memory_space<vmem>>, vector<2x32xf32>
    tpu.vector_store %arg9[%c8_23, %c0_24], %93 {strides = array<i32>} : memref<16x32xf32, #tpu.memory_space<vmem>>, vector<2x32xf32>,
    %c10 = arith.constant 10 : index
    %c0_25 = arith.constant 0 : index
    %95 = vector.load %arg0[%c10, %c0_25] : memref<16x128xf32, #tpu.memory_space<vmem>>, vector<2x128xf32>
    %96 = arith.truncf %93 : vector<2x32xf32> to vector<2x32xbf16>
    %cst_26 = arith.constant dense<0.000000e+00> : vector<2x128xf32>
    %97 = tpu.matmul %96, %0, %cst_26 {dimension_numbers = #tpu.dot_dimension_numbers<[1], [0], [0], [1], [0, 0, 1, 1], [], []>} : vector<2x32xbf16>, vector<32x128xbf16>, vector<2x128xf32> -> vector<2x128xf32>
    %98 = arith.addf %95, %97 : vector<2x128xf32>
    %99 = arith.negf %98 : vector<2x128xf32>
    %100 = math.exp %99 : vector<2x128xf32>
    %cst_27 = arith.constant 1.000000e+00 : f32
    %101 = vector.broadcast %cst_27 : f32 to vector<2x128xf32>
    %102 = arith.addf %101, %100 : vector<2x128xf32>
    %103 = arith.divf %101, %102 : vector<2x128xf32>
    %104 = math.tanh %98 : vector<2x128xf32>
    %105 = vector.extract_strided_slice %103 {offsets = [0, 0], sizes = [2, 32], strides = [1, 1]} : vector<2x128xf32> to vector<2x32xf32>
    %106 = vector.extract_strided_slice %103 {offsets = [0, 32], sizes = [2, 32], strides = [1, 1]} : vector<2x128xf32> to vector<2x32xf32>
    %107 = vector.extract_strided_slice %104 {offsets = [0, 64], sizes = [2, 32], strides = [1, 1]} : vector<2x128xf32> to vector<2x32xf32>
    %108 = vector.extract_strided_slice %103 {offsets = [0, 96], sizes = [2, 32], strides = [1, 1]} : vector<2x128xf32> to vector<2x32xf32>
    %109 = arith.mulf %106, %91 : vector<2x32xf32>
    %110 = arith.mulf %105, %107 : vector<2x32xf32>
    %111 = arith.addf %109, %110 : vector<2x32xf32>
    %112 = math.tanh %111 : vector<2x32xf32>
    %113 = arith.mulf %108, %112 : vector<2x32xf32>
    %c10_28 = arith.constant 10 : index
    %c0_29 = arith.constant 0 : index
    %114 = vector.load %arg9[%c10_28, %c0_29] : memref<16x32xf32, #tpu.memory_space<vmem>>, vector<2x32xf32>
    tpu.vector_store %arg9[%c10_28, %c0_29], %113 {strides = array<i32>} : memref<16x32xf32, #tpu.memory_space<vmem>>, vector<2x32xf32>,
    %c12 = arith.constant 12 : index
    %c0_30 = arith.constant 0 : index
    %115 = vector.load %arg0[%c12, %c0_30] : memref<16x128xf32, #tpu.memory_space<vmem>>, vector<2x128xf32>
    %116 = arith.truncf %113 : vector<2x32xf32> to vector<2x32xbf16>
    %cst_31 = arith.constant dense<0.000000e+00> : vector<2x128xf32>
    %117 = tpu.matmul %116, %0, %cst_31 {dimension_numbers = #tpu.dot_dimension_numbers<[1], [0], [0], [1], [0, 0, 1, 1], [], []>} : vector<2x32xbf16>, vector<32x128xbf16>, vector<2x128xf32> -> vector<2x128xf32>
    %118 = arith.addf %115, %117 : vector<2x128xf32>
    %119 = arith.negf %118 : vector<2x128xf32>
    %120 = math.exp %119 : vector<2x128xf32>
    %cst_32 = arith.constant 1.000000e+00 : f32
    %121 = vector.broadcast %cst_32 : f32 to vector<2x128xf32>
    %122 = arith.addf %121, %120 : vector<2x128xf32>
    %123 = arith.divf %121, %122 : vector<2x128xf32>
    %124 = math.tanh %118 : vector<2x128xf32>
    %125 = vector.extract_strided_slice %123 {offsets = [0, 0], sizes = [2, 32], strides = [1, 1]} : vector<2x128xf32> to vector<2x32xf32>
    %126 = vector.extract_strided_slice %123 {offsets = [0, 32], sizes = [2, 32], strides = [1, 1]} : vector<2x128xf32> to vector<2x32xf32>
    %127 = vector.extract_strided_slice %124 {offsets = [0, 64], sizes = [2, 32], strides = [1, 1]} : vector<2x128xf32> to vector<2x32xf32>
    %128 = vector.extract_strided_slice %123 {offsets = [0, 96], sizes = [2, 32], strides = [1, 1]} : vector<2x128xf32> to vector<2x32xf32>
    %129 = arith.mulf %126, %111 : vector<2x32xf32>
    %130 = arith.mulf %125, %127 : vector<2x32xf32>
    %131 = arith.addf %129, %130 : vector<2x32xf32>
    %132 = math.tanh %131 : vector<2x32xf32>
    %133 = arith.mulf %128, %132 : vector<2x32xf32>
    %c12_33 = arith.constant 12 : index
    %c0_34 = arith.constant 0 : index
    %134 = vector.load %arg9[%c12_33, %c0_34] : memref<16x32xf32, #tpu.memory_space<vmem>>, vector<2x32xf32>
    tpu.vector_store %arg9[%c12_33, %c0_34], %133 {strides = array<i32>} : memref<16x32xf32, #tpu.memory_space<vmem>>, vector<2x32xf32>,
    %c14 = arith.constant 14 : index
    %c0_35 = arith.constant 0 : index
    %135 = vector.load %arg0[%c14, %c0_35] : memref<16x128xf32, #tpu.memory_space<vmem>>, vector<2x128xf32>
    %136 = arith.truncf %133 : vector<2x32xf32> to vector<2x32xbf16>
    %cst_36 = arith.constant dense<0.000000e+00> : vector<2x128xf32>
    %137 = tpu.matmul %136, %0, %cst_36 {dimension_numbers = #tpu.dot_dimension_numbers<[1], [0], [0], [1], [0, 0, 1, 1], [], []>} : vector<2x32xbf16>, vector<32x128xbf16>, vector<2x128xf32> -> vector<2x128xf32>
    %138 = arith.addf %135, %137 : vector<2x128xf32>
    %139 = arith.negf %138 : vector<2x128xf32>
    %140 = math.exp %139 : vector<2x128xf32>
    %cst_37 = arith.constant 1.000000e+00 : f32
    %141 = vector.broadcast %cst_37 : f32 to vector<2x128xf32>
    %142 = arith.addf %141, %140 : vector<2x128xf32>
    %143 = arith.divf %141, %142 : vector<2x128xf32>
    %144 = math.tanh %138 : vector<2x128xf32>
    %145 = vector.extract_strided_slice %143 {offsets = [0, 0], sizes = [2, 32], strides = [1, 1]} : vector<2x128xf32> to vector<2x32xf32>
    %146 = vector.extract_strided_slice %143 {offsets = [0, 32], sizes = [2, 32], strides = [1, 1]} : vector<2x128xf32> to vector<2x32xf32>
    %147 = vector.extract_strided_slice %144 {offsets = [0, 64], sizes = [2, 32], strides = [1, 1]} : vector<2x128xf32> to vector<2x32xf32>
    %148 = vector.extract_strided_slice %143 {offsets = [0, 96], sizes = [2, 32], strides = [1, 1]} : vector<2x128xf32> to vector<2x32xf32>
    %149 = arith.mulf %146, %131 : vector<2x32xf32>
    %150 = arith.mulf %145, %147 : vector<2x32xf32>
    %151 = arith.addf %149, %150 : vector<2x32xf32>
    %152 = math.tanh %151 : vector<2x32xf32>
    %153 = arith.mulf %148, %152 : vector<2x32xf32>
    %c14_38 = arith.constant 14 : index
    %c0_39 = arith.constant 0 : index
    %154 = vector.load %arg9[%c14_38, %c0_39] : memref<16x32xf32, #tpu.memory_space<vmem>>, vector<2x32xf32>
    tpu.vector_store %arg9[%c14_38, %c0_39], %153 {strides = array<i32>} : memref<16x32xf32, #tpu.memory_space<vmem>>, vector<2x32xf32>,
    %c0_40 = arith.constant 0 : index
    %c0_41 = arith.constant 0 : index
    %155 = vector.load %arg9[%c0_40, %c0_41] : memref<16x32xf32, #tpu.memory_space<vmem>>, vector<16x32xf32>
    %156 = arith.truncf %155 : vector<16x32xf32> to vector<16x32xbf16>
    %c0_42 = arith.constant 0 : index
    %c0_43 = arith.constant 0 : index
    %c0_44 = arith.constant 0 : index
    %157 = vector.load %arg2[%c0_42, %c0_43, %c0_44] : memref<1x32x128xbf16, #tpu.memory_space<vmem>>, vector<1x32x128xbf16>
    %158 = vector.shape_cast %157 : vector<1x32x128xbf16> to vector<32x128xbf16>
    %cst_45 = arith.constant dense<0.000000e+00> : vector<16x128xf32>
    %159 = tpu.matmul %156, %158, %cst_45 {dimension_numbers = #tpu.dot_dimension_numbers<[1], [0], [0], [1], [0, 0, 1, 1], [], []>} : vector<16x32xbf16>, vector<32x128xbf16>, vector<16x128xf32> -> vector<16x128xf32>
    %c0_46 = arith.constant 0 : index
    %c0_47 = arith.constant 0 : index
    %c0_48 = arith.constant 0 : index
    %160 = vector.load %arg4[%c0_46, %c0_47, %c0_48] : memref<1x1x128xf32, #tpu.memory_space<vmem>>, vector<1x1x128xf32>
    %161 = vector.shape_cast %160 : vector<1x1x128xf32> to vector<1x128xf32>
    %162 = vector.broadcast %161 : vector<1x128xf32> to vector<16x128xf32>
    %163 = arith.addf %159, %162 : vector<16x128xf32>
    %c0_49 = arith.constant 0 : index
    %c0_50 = arith.constant 0 : index
    %164 = vector.load %arg8[%c0_49, %c0_50] : memref<16x128xf32, #tpu.memory_space<vmem>>, vector<16x128xf32>
    tpu.vector_store %arg8[%c0_49, %c0_50], %163 {strides = array<i32>} : memref<16x128xf32, #tpu.memory_space<vmem>>, vector<16x128xf32>,
    %c0_51 = arith.constant 0 : index
    %c0_52 = arith.constant 0 : index
    %c0_53 = arith.constant 0 : index
    %165 = vector.load %arg3[%c0_51, %c0_52, %c0_53] : memref<1x32x128xbf16, #tpu.memory_space<vmem>>, vector<1x32x128xbf16>
    %166 = vector.shape_cast %165 : vector<1x32x128xbf16> to vector<32x128xbf16>
    %c0_54 = arith.constant 0 : index
    %c0_55 = arith.constant 0 : index
    %167 = vector.load %arg8[%c0_54, %c0_55] : memref<16x128xf32, #tpu.memory_space<vmem>>, vector<2x128xf32>
    %168 = arith.negf %167 : vector<2x128xf32>
    %169 = math.exp %168 : vector<2x128xf32>
    %cst_56 = arith.constant 1.000000e+00 : f32
    %170 = vector.broadcast %cst_56 : f32 to vector<2x128xf32>
    %171 = arith.addf %170, %169 : vector<2x128xf32>
    %172 = arith.divf %170, %171 : vector<2x128xf32>
    %173 = math.tanh %167 : vector<2x128xf32>
    %174 = vector.extract_strided_slice %172 {offsets = [0, 0], sizes = [2, 32], strides = [1, 1]} : vector<2x128xf32> to vector<2x32xf32>
    %175 = vector.extract_strided_slice %173 {offsets = [0, 64], sizes = [2, 32], strides = [1, 1]} : vector<2x128xf32> to vector<2x32xf32>
    %176 = vector.extract_strided_slice %172 {offsets = [0, 96], sizes = [2, 32], strides = [1, 1]} : vector<2x128xf32> to vector<2x32xf32>
    %177 = arith.mulf %174, %175 : vector<2x32xf32>
    %178 = math.tanh %177 : vector<2x32xf32>
    %179 = arith.mulf %176, %178 : vector<2x32xf32>
    %c2_57 = arith.constant 2 : index
    %c0_58 = arith.constant 0 : index
    %180 = vector.load %arg8[%c2_57, %c0_58] : memref<16x128xf32, #tpu.memory_space<vmem>>, vector<2x128xf32>
    %181 = arith.truncf %179 : vector<2x32xf32> to vector<2x32xbf16>
    %cst_59 = arith.constant dense<0.000000e+00> : vector<2x128xf32>
    %182 = tpu.matmul %181, %166, %cst_59 {dimension_numbers = #tpu.dot_dimension_numbers<[1], [0], [0], [1], [0, 0, 1, 1], [], []>} : vector<2x32xbf16>, vector<32x128xbf16>, vector<2x128xf32> -> vector<2x128xf32>
    %183 = arith.addf %180, %182 : vector<2x128xf32>
    %184 = arith.negf %183 : vector<2x128xf32>
    %185 = math.exp %184 : vector<2x128xf32>
    %cst_60 = arith.constant 1.000000e+00 : f32
    %186 = vector.broadcast %cst_60 : f32 to vector<2x128xf32>
    %187 = arith.addf %186, %185 : vector<2x128xf32>
    %188 = arith.divf %186, %187 : vector<2x128xf32>
    %189 = math.tanh %183 : vector<2x128xf32>
    %190 = vector.extract_strided_slice %188 {offsets = [0, 0], sizes = [2, 32], strides = [1, 1]} : vector<2x128xf32> to vector<2x32xf32>
    %191 = vector.extract_strided_slice %188 {offsets = [0, 32], sizes = [2, 32], strides = [1, 1]} : vector<2x128xf32> to vector<2x32xf32>
    %192 = vector.extract_strided_slice %189 {offsets = [0, 64], sizes = [2, 32], strides = [1, 1]} : vector<2x128xf32> to vector<2x32xf32>
    %193 = vector.extract_strided_slice %188 {offsets = [0, 96], sizes = [2, 32], strides = [1, 1]} : vector<2x128xf32> to vector<2x32xf32>
    %194 = arith.mulf %191, %177 : vector<2x32xf32>
    %195 = arith.mulf %190, %192 : vector<2x32xf32>
    %196 = arith.addf %194, %195 : vector<2x32xf32>
    %197 = math.tanh %196 : vector<2x32xf32>
    %198 = arith.mulf %193, %197 : vector<2x32xf32>
    %c4_61 = arith.constant 4 : index
    %c0_62 = arith.constant 0 : index
    %199 = vector.load %arg8[%c4_61, %c0_62] : memref<16x128xf32, #tpu.memory_space<vmem>>, vector<2x128xf32>
    %200 = arith.truncf %198 : vector<2x32xf32> to vector<2x32xbf16>
    %cst_63 = arith.constant dense<0.000000e+00> : vector<2x128xf32>
    %201 = tpu.matmul %200, %166, %cst_63 {dimension_numbers = #tpu.dot_dimension_numbers<[1], [0], [0], [1], [0, 0, 1, 1], [], []>} : vector<2x32xbf16>, vector<32x128xbf16>, vector<2x128xf32> -> vector<2x128xf32>
    %202 = arith.addf %199, %201 : vector<2x128xf32>
    %203 = arith.negf %202 : vector<2x128xf32>
    %204 = math.exp %203 : vector<2x128xf32>
    %cst_64 = arith.constant 1.000000e+00 : f32
    %205 = vector.broadcast %cst_64 : f32 to vector<2x128xf32>
    %206 = arith.addf %205, %204 : vector<2x128xf32>
    %207 = arith.divf %205, %206 : vector<2x128xf32>
    %208 = math.tanh %202 : vector<2x128xf32>
    %209 = vector.extract_strided_slice %207 {offsets = [0, 0], sizes = [2, 32], strides = [1, 1]} : vector<2x128xf32> to vector<2x32xf32>
    %210 = vector.extract_strided_slice %207 {offsets = [0, 32], sizes = [2, 32], strides = [1, 1]} : vector<2x128xf32> to vector<2x32xf32>
    %211 = vector.extract_strided_slice %208 {offsets = [0, 64], sizes = [2, 32], strides = [1, 1]} : vector<2x128xf32> to vector<2x32xf32>
    %212 = vector.extract_strided_slice %207 {offsets = [0, 96], sizes = [2, 32], strides = [1, 1]} : vector<2x128xf32> to vector<2x32xf32>
    %213 = arith.mulf %210, %196 : vector<2x32xf32>
    %214 = arith.mulf %209, %211 : vector<2x32xf32>
    %215 = arith.addf %213, %214 : vector<2x32xf32>
    %216 = math.tanh %215 : vector<2x32xf32>
    %217 = arith.mulf %212, %216 : vector<2x32xf32>
    %c6_65 = arith.constant 6 : index
    %c0_66 = arith.constant 0 : index
    %218 = vector.load %arg8[%c6_65, %c0_66] : memref<16x128xf32, #tpu.memory_space<vmem>>, vector<2x128xf32>
    %219 = arith.truncf %217 : vector<2x32xf32> to vector<2x32xbf16>
    %cst_67 = arith.constant dense<0.000000e+00> : vector<2x128xf32>
    %220 = tpu.matmul %219, %166, %cst_67 {dimension_numbers = #tpu.dot_dimension_numbers<[1], [0], [0], [1], [0, 0, 1, 1], [], []>} : vector<2x32xbf16>, vector<32x128xbf16>, vector<2x128xf32> -> vector<2x128xf32>
    %221 = arith.addf %218, %220 : vector<2x128xf32>
    %222 = arith.negf %221 : vector<2x128xf32>
    %223 = math.exp %222 : vector<2x128xf32>
    %cst_68 = arith.constant 1.000000e+00 : f32
    %224 = vector.broadcast %cst_68 : f32 to vector<2x128xf32>
    %225 = arith.addf %224, %223 : vector<2x128xf32>
    %226 = arith.divf %224, %225 : vector<2x128xf32>
    %227 = math.tanh %221 : vector<2x128xf32>
    %228 = vector.extract_strided_slice %226 {offsets = [0, 0], sizes = [2, 32], strides = [1, 1]} : vector<2x128xf32> to vector<2x32xf32>
    %229 = vector.extract_strided_slice %226 {offsets = [0, 32], sizes = [2, 32], strides = [1, 1]} : vector<2x128xf32> to vector<2x32xf32>
    %230 = vector.extract_strided_slice %227 {offsets = [0, 64], sizes = [2, 32], strides = [1, 1]} : vector<2x128xf32> to vector<2x32xf32>
    %231 = vector.extract_strided_slice %226 {offsets = [0, 96], sizes = [2, 32], strides = [1, 1]} : vector<2x128xf32> to vector<2x32xf32>
    %232 = arith.mulf %229, %215 : vector<2x32xf32>
    %233 = arith.mulf %228, %230 : vector<2x32xf32>
    %234 = arith.addf %232, %233 : vector<2x32xf32>
    %235 = math.tanh %234 : vector<2x32xf32>
    %236 = arith.mulf %231, %235 : vector<2x32xf32>
    %c8_69 = arith.constant 8 : index
    %c0_70 = arith.constant 0 : index
    %237 = vector.load %arg8[%c8_69, %c0_70] : memref<16x128xf32, #tpu.memory_space<vmem>>, vector<2x128xf32>
    %238 = arith.truncf %236 : vector<2x32xf32> to vector<2x32xbf16>
    %cst_71 = arith.constant dense<0.000000e+00> : vector<2x128xf32>
    %239 = tpu.matmul %238, %166, %cst_71 {dimension_numbers = #tpu.dot_dimension_numbers<[1], [0], [0], [1], [0, 0, 1, 1], [], []>} : vector<2x32xbf16>, vector<32x128xbf16>, vector<2x128xf32> -> vector<2x128xf32>
    %240 = arith.addf %237, %239 : vector<2x128xf32>
    %241 = arith.negf %240 : vector<2x128xf32>
    %242 = math.exp %241 : vector<2x128xf32>
    %cst_72 = arith.constant 1.000000e+00 : f32
    %243 = vector.broadcast %cst_72 : f32 to vector<2x128xf32>
    %244 = arith.addf %243, %242 : vector<2x128xf32>
    %245 = arith.divf %243, %244 : vector<2x128xf32>
    %246 = math.tanh %240 : vector<2x128xf32>
    %247 = vector.extract_strided_slice %245 {offsets = [0, 0], sizes = [2, 32], strides = [1, 1]} : vector<2x128xf32> to vector<2x32xf32>
    %248 = vector.extract_strided_slice %245 {offsets = [0, 32], sizes = [2, 32], strides = [1, 1]} : vector<2x128xf32> to vector<2x32xf32>
    %249 = vector.extract_strided_slice %246 {offsets = [0, 64], sizes = [2, 32], strides = [1, 1]} : vector<2x128xf32> to vector<2x32xf32>
    %250 = vector.extract_strided_slice %245 {offsets = [0, 96], sizes = [2, 32], strides = [1, 1]} : vector<2x128xf32> to vector<2x32xf32>
    %251 = arith.mulf %248, %234 : vector<2x32xf32>
    %252 = arith.mulf %247, %249 : vector<2x32xf32>
    %253 = arith.addf %251, %252 : vector<2x32xf32>
    %254 = math.tanh %253 : vector<2x32xf32>
    %255 = arith.mulf %250, %254 : vector<2x32xf32>
    %c10_73 = arith.constant 10 : index
    %c0_74 = arith.constant 0 : index
    %256 = vector.load %arg8[%c10_73, %c0_74] : memref<16x128xf32, #tpu.memory_space<vmem>>, vector<2x128xf32>
    %257 = arith.truncf %255 : vector<2x32xf32> to vector<2x32xbf16>
    %cst_75 = arith.constant dense<0.000000e+00> : vector<2x128xf32>
    %258 = tpu.matmul %257, %166, %cst_75 {dimension_numbers = #tpu.dot_dimension_numbers<[1], [0], [0], [1], [0, 0, 1, 1], [], []>} : vector<2x32xbf16>, vector<32x128xbf16>, vector<2x128xf32> -> vector<2x128xf32>
    %259 = arith.addf %256, %258 : vector<2x128xf32>
    %260 = arith.negf %259 : vector<2x128xf32>
    %261 = math.exp %260 : vector<2x128xf32>
    %cst_76 = arith.constant 1.000000e+00 : f32
    %262 = vector.broadcast %cst_76 : f32 to vector<2x128xf32>
    %263 = arith.addf %262, %261 : vector<2x128xf32>
    %264 = arith.divf %262, %263 : vector<2x128xf32>
    %265 = math.tanh %259 : vector<2x128xf32>
    %266 = vector.extract_strided_slice %264 {offsets = [0, 0], sizes = [2, 32], strides = [1, 1]} : vector<2x128xf32> to vector<2x32xf32>
    %267 = vector.extract_strided_slice %264 {offsets = [0, 32], sizes = [2, 32], strides = [1, 1]} : vector<2x128xf32> to vector<2x32xf32>
    %268 = vector.extract_strided_slice %265 {offsets = [0, 64], sizes = [2, 32], strides = [1, 1]} : vector<2x128xf32> to vector<2x32xf32>
    %269 = vector.extract_strided_slice %264 {offsets = [0, 96], sizes = [2, 32], strides = [1, 1]} : vector<2x128xf32> to vector<2x32xf32>
    %270 = arith.mulf %267, %253 : vector<2x32xf32>
    %271 = arith.mulf %266, %268 : vector<2x32xf32>
    %272 = arith.addf %270, %271 : vector<2x32xf32>
    %273 = math.tanh %272 : vector<2x32xf32>
    %274 = arith.mulf %269, %273 : vector<2x32xf32>
    %c12_77 = arith.constant 12 : index
    %c0_78 = arith.constant 0 : index
    %275 = vector.load %arg8[%c12_77, %c0_78] : memref<16x128xf32, #tpu.memory_space<vmem>>, vector<2x128xf32>
    %276 = arith.truncf %274 : vector<2x32xf32> to vector<2x32xbf16>
    %cst_79 = arith.constant dense<0.000000e+00> : vector<2x128xf32>
    %277 = tpu.matmul %276, %166, %cst_79 {dimension_numbers = #tpu.dot_dimension_numbers<[1], [0], [0], [1], [0, 0, 1, 1], [], []>} : vector<2x32xbf16>, vector<32x128xbf16>, vector<2x128xf32> -> vector<2x128xf32>
    %278 = arith.addf %275, %277 : vector<2x128xf32>
    %279 = arith.negf %278 : vector<2x128xf32>
    %280 = math.exp %279 : vector<2x128xf32>
    %cst_80 = arith.constant 1.000000e+00 : f32
    %281 = vector.broadcast %cst_80 : f32 to vector<2x128xf32>
    %282 = arith.addf %281, %280 : vector<2x128xf32>
    %283 = arith.divf %281, %282 : vector<2x128xf32>
    %284 = math.tanh %278 : vector<2x128xf32>
    %285 = vector.extract_strided_slice %283 {offsets = [0, 0], sizes = [2, 32], strides = [1, 1]} : vector<2x128xf32> to vector<2x32xf32>
    %286 = vector.extract_strided_slice %283 {offsets = [0, 32], sizes = [2, 32], strides = [1, 1]} : vector<2x128xf32> to vector<2x32xf32>
    %287 = vector.extract_strided_slice %284 {offsets = [0, 64], sizes = [2, 32], strides = [1, 1]} : vector<2x128xf32> to vector<2x32xf32>
    %288 = vector.extract_strided_slice %283 {offsets = [0, 96], sizes = [2, 32], strides = [1, 1]} : vector<2x128xf32> to vector<2x32xf32>
    %289 = arith.mulf %286, %272 : vector<2x32xf32>
    %290 = arith.mulf %285, %287 : vector<2x32xf32>
    %291 = arith.addf %289, %290 : vector<2x32xf32>
    %292 = math.tanh %291 : vector<2x32xf32>
    %293 = arith.mulf %288, %292 : vector<2x32xf32>
    %c14_81 = arith.constant 14 : index
    %c0_82 = arith.constant 0 : index
    %294 = vector.load %arg8[%c14_81, %c0_82] : memref<16x128xf32, #tpu.memory_space<vmem>>, vector<2x128xf32>
    %295 = arith.truncf %293 : vector<2x32xf32> to vector<2x32xbf16>
    %cst_83 = arith.constant dense<0.000000e+00> : vector<2x128xf32>
    %296 = tpu.matmul %295, %166, %cst_83 {dimension_numbers = #tpu.dot_dimension_numbers<[1], [0], [0], [1], [0, 0, 1, 1], [], []>} : vector<2x32xbf16>, vector<32x128xbf16>, vector<2x128xf32> -> vector<2x128xf32>
    %297 = arith.addf %294, %296 : vector<2x128xf32>
    %298 = arith.negf %297 : vector<2x128xf32>
    %299 = math.exp %298 : vector<2x128xf32>
    %cst_84 = arith.constant 1.000000e+00 : f32
    %300 = vector.broadcast %cst_84 : f32 to vector<2x128xf32>
    %301 = arith.addf %300, %299 : vector<2x128xf32>
    %302 = arith.divf %300, %301 : vector<2x128xf32>
    %303 = math.tanh %297 : vector<2x128xf32>
    %304 = vector.extract_strided_slice %302 {offsets = [0, 0], sizes = [2, 32], strides = [1, 1]} : vector<2x128xf32> to vector<2x32xf32>
    %305 = vector.extract_strided_slice %302 {offsets = [0, 32], sizes = [2, 32], strides = [1, 1]} : vector<2x128xf32> to vector<2x32xf32>
    %306 = vector.extract_strided_slice %303 {offsets = [0, 64], sizes = [2, 32], strides = [1, 1]} : vector<2x128xf32> to vector<2x32xf32>
    %307 = vector.extract_strided_slice %302 {offsets = [0, 96], sizes = [2, 32], strides = [1, 1]} : vector<2x128xf32> to vector<2x32xf32>
    %308 = arith.mulf %305, %291 : vector<2x32xf32>
    %309 = arith.mulf %304, %306 : vector<2x32xf32>
    %310 = arith.addf %308, %309 : vector<2x32xf32>
    %311 = math.tanh %310 : vector<2x32xf32>
    %312 = arith.mulf %307, %311 : vector<2x32xf32>
    %c0_85 = arith.constant 0 : index
    %c0_86 = arith.constant 0 : index
    %313 = vector.load %arg5[%c0_85, %c0_86] : memref<32x10xf32, #tpu.memory_space<vmem>>, vector<32x10xf32>
    %cst_87 = arith.constant dense<0.000000e+00> : vector<2x10xf32>
    %314 = tpu.matmul %312, %313, %cst_87 {dimension_numbers = #tpu.dot_dimension_numbers<[1], [0], [0], [1], [0, 0, 1, 1], [], []>} : vector<2x32xf32>, vector<32x10xf32>, vector<2x10xf32> -> vector<2x10xf32>
    %c0_88 = arith.constant 0 : index
    %c0_89 = arith.constant 0 : index
    %315 = vector.load %arg6[%c0_88, %c0_89] : memref<1x10xf32, #tpu.memory_space<vmem>>, vector<1x10xf32>
    %316 = vector.broadcast %315 : vector<1x10xf32> to vector<2x10xf32>
    %317 = arith.addf %314, %316 : vector<2x10xf32>
    %c0_90 = arith.constant 0 : index
    %c0_91 = arith.constant 0 : index
    %318 = vector.load %arg7[%c0_90, %c0_91] : memref<2x10xf32, #tpu.memory_space<vmem>>, vector<2x10xf32>
    tpu.vector_store %arg7[%c0_90, %c0_91], %317 {strides = array<i32>} : memref<2x10xf32, #tpu.memory_space<vmem>>, vector<2x10xf32>,
    return
  }
}

</mosaic_0001>

<llo_original>
// kernel: tpu_custom_call.1
$region0: #{tpu_custom_call.1}
  #allocation0 [shape = 'u32[]', space=smem, size = 0x4, offset = 0x4, fixed_abs, tag = 'smem constant byte address 0x4 - core index']
  #allocation1 [shape = 'u32[72,128]{1,0:T(1,128)}', space=vmem, size = 0x9000, scoped, tag = 'internal scratch']
  #allocation2 [shape = 'f32[16,128]{1,0:T(8,128)}', space=vmem, size = 0x2000, scoped, tag = 'scratch operand']
  #allocation3 [shape = 'f32[16,32]{1,0:T(8,128)}', space=vmem, size = 0x2000, scoped, tag = 'scratch operand']
  %s0 = inlined_call_operand.vmem [shape: f32[16,128], index: 0, kind: input, shape index: {}]
  %s1 = inlined_call_operand.vmem [shape: bf16[32,128], index: 1, kind: input, shape index: {}]
  %s2 = inlined_call_operand.vmem [shape: bf16[1,32,128], index: 2, kind: input, shape index: {}]
  %s3 = inlined_call_operand.hbm [shape: bf16[1,32,128], index: 3, kind: input, shape index: {}]
  %s4 = inlined_call_operand.vmem [shape: f32[1,1,128], index: 4, kind: input, shape index: {}]
  %s5 = inlined_call_operand.vmem [shape: f32[32,10], index: 5, kind: input, shape index: {}]
  %s6 = inlined_call_operand.vmem [shape: f32[1,10], index: 6, kind: input, shape index: {}]
  %s7 = inlined_call_operand.hbm [shape: f32[2,10], index: 7, kind: output, shape index: {}]
  %s8 = sld [smem:[#allocation0]]
  $region42: #{tpu_custom_call.1} parent=0
    _
  %s10 = ssub.s32 1, %s8
  %s11 = scalar_select 0, %s10, %s8
  $region1: #{tpu_custom_call.1} parent=0
    #allocation4 [shape = 'u8[8192]{0}', space=vmem, size = 0x2000, scoped, tag = 'input window, operand 3, single buffered']
    #allocation5 [shape = 's32[1]{0}', space=sflag, size = 0x4, scoped, tag = 'scoped memory for tpu_custom_call.1']
    #allocation6 [shape = 's32[1]{0}', space=sflag, size = 0x4, scoped, tag = 'scoped memory for tpu_custom_call.1']
    #allocation7 [shape = 'u8[1024]{0}', space=vmem, size = 0x400, scoped, tag = 'output window, operand 0, single buffered']
    %12 = vsyncpa [#allocation5], 0
    %13 = vsyncpa [#allocation6], 0
    // Predicated region
    $region2: #{tpu_custom_call.1} parent=1 // pred_check
      _
    $region3: #{tpu_custom_call.1} parent=1 // pred_check_branch
      %15 = sbr.rel (0) target = $region5
    $region4: #{tpu_custom_call.1} parent=1 // pred_region
      _
    $region5: #{tpu_custom_call.1} parent=1 // pred_fallthru
      _
    // Predicated region
    $region6: #{tpu_custom_call.1} parent=1 // pred_check
      _
    $region7: #{tpu_custom_call.1} parent=1 // pred_check_branch
      %17 = sbr.rel (0) target = $region9
    $region8: #{tpu_custom_call.1} parent=1 // pred_region
      _
    $region9: #{tpu_custom_call.1} parent=1 // pred_fallthru
      _
    // Predicated region
    $region10: #{tpu_custom_call.1} parent=1 // pred_check
      _
    $region11: #{tpu_custom_call.1} parent=1 // pred_check_branch
      %19 = sbr.rel (0) target = $region13
    $region12: #{tpu_custom_call.1} parent=1 // pred_region
      _
    $region13: #{tpu_custom_call.1} parent=1 // pred_fallthru
      _
    // Predicated region
    $region14: #{tpu_custom_call.1} parent=1 // pred_check
      _
    $region15: #{tpu_custom_call.1} parent=1 // pred_check_branch
      %21 = sbr.rel (0) target = $region17
    $region16: #{tpu_custom_call.1} parent=1 // pred_region
      %23 = vsyncadd [#allocation5], 0
      %s24 = sshll.u32 %s3, 4
      %s25 = int_to_ptr.hbm [resolvable:$true] %s24
      %s26 = sshll.u32 [#allocation4], 4
      %s27 = int_to_ptr.vmem [resolvable:$true] %s26
      %32 = dma.hbm_to_vmem [thread:$0]  %s25, 256, %s27, [#allocation5], 64, 64, 4
    $region17: #{tpu_custom_call.1} parent=1 // pred_fallthru
      _
    // Predicated region
    $region18: #{tpu_custom_call.1} parent=1 // pred_check
      _
    $region19: #{tpu_custom_call.1} parent=1 // pred_check_branch
      %34 = sbr.rel (0) target = $region21
    $region20: #{tpu_custom_call.1} parent=1 // pred_region
      _
    $region21: #{tpu_custom_call.1} parent=1 // pred_fallthru
      _
    // Predicated region
    $region22: #{tpu_custom_call.1} parent=1 // pred_check
      _
    $region23: #{tpu_custom_call.1} parent=1 // pred_check_branch
      %36 = sbr.rel (0) target = $region25
    $region24: #{tpu_custom_call.1} parent=1 // pred_region
      _
    $region25: #{tpu_custom_call.1} parent=1 // pred_fallthru
      _
    // Predicated region
    $region26: #{tpu_custom_call.1} parent=1 // pred_check
      _
    $region27: #{tpu_custom_call.1} parent=1 // pred_check_branch
      %38 = sbr.rel (0) target = $region29
    $region28: #{tpu_custom_call.1} parent=1 // pred_region
      _
    $region29: #{tpu_custom_call.1} parent=1 // pred_fallthru
      _
    // Predicated region
    $region30: #{tpu_custom_call.1} parent=1 // pred_check
      _
    $region31: #{tpu_custom_call.1} parent=1 // pred_check_branch
      %40 = sbr.rel (0) target = $region33
    $region32: #{tpu_custom_call.1} parent=1 // pred_region
      %42 = dma.done [#allocation5], 256
    $region33: #{tpu_custom_call.1} parent=1 // pred_fallthru
      _
    %v44 = vld [vmem:[%s1] sm:$0xf]
    %v45 = vld [vmem:[%s1 + $0x4] sm:$0xf]
    %v46 = vld [vmem:[%s1 + $0x8] sm:$0xf]
    %v47 = vld [vmem:[%s1 + $0xc] sm:$0xf]
    %v48 = vld [vmem:[%s0] sm:$0x3]
    %v49 = vxor.u32 %v48, 2147483648
    %v50 = vmul.f32 %v49, 1.442695
    %v51 = vpow.pop %v50
    %v52 = vadd.f32 %v51, 1.0
    %v53 = vrcp.pop %v52
    %v54 = vmul.f32 %v52, %v53
    %v55 = vsub.f32 1.0, %v54
    %v56 = vmul.f32 %v53, %v55
    %v57 = vadd.f32 %v53, %v56
    %vm58 = vweird.f32 %v52
    %vm59 = vweird.f32 %v53
    %vm60 = vmor %vm58, %vm59
    %v61 = vsel %vm60, %v53, %v57
    %v62 = vand.u32 2147483647, %v52
    %vm63 = vcmp.eq.f32.partialorder %v62, 8.507059e+37
    %v64 = vand.u32 %v52, 2147483648
    %v65 = vor.u32 1.1754944e-38, %v64
    %v66 = vsel %vm63, %v65, %v61
    %v67 = vmul.f32 1.0, %v66
    %v68 = vtanh.pop %v48
    %70 = vrot.lane.b32.xlu0 %v68, 64
    %v71 = vpop.permute.xlu0 %70
    %v73 = vmul.f32 %v67, %v71
    %v74 = vtanh.pop %v73
    %76 = vrot.lane.b32.xlu0 %v74, 96
    %v77 = vpop.permute.xlu0 %76
    %v79 = vmul.f32 %v67, %v77
    %81 = vrot.lane.b32.xlu0 %v79, 32
    %v82 = vpop.permute.xlu0 %81
    %vm84 = vcmask 254976
    %85 = vst.msk [vmem:[#allocation3] sm:$0x3] %vm84, %v82
    %v86 = vld [vmem:[%s0 + $0x2] sm:$0x3]
    %v87 = vpack.c.bf16 %v79, %v79
    %89 = vrot.lane.b32.xlu0 %v87, 32
    %v90 = vpop.permute.xlu0 %89
    %v95 = vunpack.c.l.b16 %v44
    %v96 = vunpack.c.l.b16 %v45
    %v97 = vunpack.c.l.b16 %v46
    %v98 = vunpack.c.l.b16 %v47
    %v99 = vpack.c.b16 %v96, %v95
    %v100 = vpack.c.b16 %v98, %v97
    %vm103 = vcmask 261120
    %v105 = vsel %vm103, %v90, 0
    %107 = vmatpush.bf16.msra.mxu0 0
    %108 = vmatpush.bf16.msra.mxu0 0
    %109 = vmatpush.bf16.msra.mxu0 0
    %110 = vmatpush.bf16.msra.mxu0 0
    %111 = vmatpush.bf16.msra.mxu0 0
    %112 = vmatpush.bf16.msra.mxu0 0
    %113 = vmatpush.bf16.msra.mxu0 %v100
    %114 = vmatpush.bf16.msra.mxu0 %v99
    %115 = vmatmul.bf16.gmra.mxu0 %v105
    %v116 = vpop.f32.mrf.mxu0
    %v117 = vadd.f32 0.0, %v116
    %v118 = vpop.f32.mrf.mxu0
    %119 = vdwg.mxu0
    %v120 = vadd.f32 %v86, %v117
    %v121 = vxor.u32 %v120, 2147483648
    %v122 = vmul.f32 %v121, 1.442695
    %v123 = vpow.pop %v122
    %v124 = vadd.f32 %v123, 1.0
    %v125 = vrcp.pop %v124
    %v126 = vmul.f32 %v124, %v125
    %v127 = vsub.f32 1.0, %v126
    %v128 = vmul.f32 %v125, %v127
    %v129 = vadd.f32 %v125, %v128
    %vm130 = vweird.f32 %v124
    %vm131 = vweird.f32 %v125
    %vm132 = vmor %vm130, %vm131
    %v133 = vsel %vm132, %v125, %v129
    %v134 = vand.u32 2147483647, %v124
    %vm135 = vcmp.eq.f32.partialorder %v134, 8.507059e+37
    %v136 = vand.u32 %v124, 2147483648
    %v137 = vor.u32 1.1754944e-38, %v136
    %v138 = vsel %vm135, %v137, %v133
    %v139 = vmul.f32 1.0, %v138
    %v140 = vtanh.pop %v120
    %142 = vrot.lane.b32.xlu0 %v73, 32
    %v143 = vpop.permute.xlu0 %142
    %v145 = vmul.f32 %v139, %v143
    %147 = vrot.lane.b32.xlu0 %v140, 64
    %v148 = vpop.permute.xlu0 %147
    %v150 = vmul.f32 %v139, %v148
    %152 = vrot.lane.b32.xlu0 %v150, 32
    %v153 = vpop.permute.xlu0 %152
    %v155 = vadd.f32 %v145, %v153
    %v156 = vtanh.pop %v155
    %158 = vrot.lane.b32.xlu0 %v156, 64
    %v159 = vpop.permute.xlu0 %158
    %v161 = vmul.f32 %v139, %v159
    %163 = vrot.lane.b32.xlu0 %v161, 32
    %v164 = vpop.permute.xlu0 %163
    %166 = vst.msk [vmem:[#allocation3 + $0x2] sm:$0x3] %vm84, %v164
    %v167 = vld [vmem:[%s0 + $0x4] sm:$0x3]
    %v168 = vpack.c.bf16 %v161, %v161
    %170 = vrot.lane.b32.xlu0 %v168, 32
    %v171 = vpop.permute.xlu0 %170
    %v173 = vsel %vm103, %v171, 0
    %175 = vmatpush.bf16.msra.mxu0 0
    %176 = vmatpush.bf16.msra.mxu0 0
    %177 = vmatpush.bf16.msra.mxu0 0
    %178 = vmatpush.bf16.msra.mxu0 0
    %179 = vmatpush.bf16.msra.mxu0 0
    %180 = vmatpush.bf16.msra.mxu0 0
    %181 = vmatpush.bf16.msra.mxu0 %v100
    %182 = vmatpush.bf16.msra.mxu0 %v99
    %183 = vmatmul.bf16.gmra.mxu0 %v173
    %v184 = vpop.f32.mrf.mxu0
    %v185 = vadd.f32 0.0, %v184
    %v186 = vpop.f32.mrf.mxu0
    %187 = vdwg.mxu0
    %v188 = vadd.f32 %v167, %v185
    %v189 = vxor.u32 %v188, 2147483648
    %v190 = vmul.f32 %v189, 1.442695
    %v191 = vpow.pop %v190
    %v192 = vadd.f32 %v191, 1.0
    %v193 = vrcp.pop %v192
    %v194 = vmul.f32 %v192, %v193
    %v195 = vsub.f32 1.0, %v194
    %v196 = vmul.f32 %v193, %v195
    %v197 = vadd.f32 %v193, %v196
    %vm198 = vweird.f32 %v192
    %vm199 = vweird.f32 %v193
    %vm200 = vmor %vm198, %vm199
    %v201 = vsel %vm200, %v193, %v197
    %v202 = vand.u32 2147483647, %v192
    %vm203 = vcmp.eq.f32.partialorder %v202, 8.507059e+37
    %v204 = vand.u32 %v192, 2147483648
    %v205 = vor.u32 1.1754944e-38, %v204
    %v206 = vsel %vm203, %v205, %v201
    %v207 = vmul.f32 1.0, %v206
    %v208 = vtanh.pop %v188
    %v209 = vmul.f32 %v207, %v155
    %211 = vrot.lane.b32.xlu0 %v208, 64
    %v212 = vpop.permute.xlu0 %211
    %v214 = vmul.f32 %v207, %v212
    %216 = vrot.lane.b32.xlu0 %v214, 32
    %v217 = vpop.permute.xlu0 %216
    %v219 = vadd.f32 %v209, %v217
    %v220 = vtanh.pop %v219
    %222 = vrot.lane.b32.xlu0 %v220, 64
    %v223 = vpop.permute.xlu0 %222
    %v225 = vmul.f32 %v207, %v223
    %227 = vrot.lane.b32.xlu0 %v225, 32
    %v228 = vpop.permute.xlu0 %227
    %230 = vst.msk [vmem:[#allocation3 + $0x4] sm:$0x3] %vm84, %v228
    %v231 = vld [vmem:[%s0 + $0x6] sm:$0x3]
    %v232 = vpack.c.bf16 %v225, %v225
    %234 = vrot.lane.b32.xlu0 %v232, 32
    %v235 = vpop.permute.xlu0 %234
    %v237 = vsel %vm103, %v235, 0
    %239 = vmatpush.bf16.msra.mxu0 0
    %240 = vmatpush.bf16.msra.mxu0 0
    %241 = vmatpush.bf16.msra.mxu0 0
    %242 = vmatpush.bf16.msra.mxu0 0
    %243 = vmatpush.bf16.msra.mxu0 0
    %244 = vmatpush.bf16.msra.mxu0 0
    %245 = vmatpush.bf16.msra.mxu0 %v100
    %246 = vmatpush.bf16.msra.mxu0 %v99
    %247 = vmatmul.bf16.gmra.mxu0 %v237
    %v248 = vpop.f32.mrf.mxu0
    %v249 = vadd.f32 0.0, %v248
    %v250 = vpop.f32.mrf.mxu0
    %251 = vdwg.mxu0
    %v252 = vadd.f32 %v231, %v249
    %v253 = vxor.u32 %v252, 2147483648
    %v254 = vmul.f32 %v253, 1.442695
    %v255 = vpow.pop %v254
    %v256 = vadd.f32 %v255, 1.0
    %v257 = vrcp.pop %v256
    %v258 = vmul.f32 %v256, %v257
    %v259 = vsub.f32 1.0, %v258
    %v260 = vmul.f32 %v257, %v259
    %v261 = vadd.f32 %v257, %v260
    %vm262 = vweird.f32 %v256
    %vm263 = vweird.f32 %v257
    %vm264 = vmor %vm262, %vm263
    %v265 = vsel %vm264, %v257, %v261
    %v266 = vand.u32 2147483647, %v256
    %vm267 = vcmp.eq.f32.partialorder %v266, 8.507059e+37
    %v268 = vand.u32 %v256, 2147483648
    %v269 = vor.u32 1.1754944e-38, %v268
    %v270 = vsel %vm267, %v269, %v265
    %v271 = vmul.f32 1.0, %v270
    %v272 = vtanh.pop %v252
    %v273 = vmul.f32 %v271, %v219
    %275 = vrot.lane.b32.xlu0 %v272, 64
    %v276 = vpop.permute.xlu0 %275
    %v278 = vmul.f32 %v271, %v276
    %280 = vrot.lane.b32.xlu0 %v278, 32
    %v281 = vpop.permute.xlu0 %280
    %v283 = vadd.f32 %v273, %v281
    %v284 = vtanh.pop %v283
    %286 = vrot.lane.b32.xlu0 %v284, 64
    %v287 = vpop.permute.xlu0 %286
    %v289 = vmul.f32 %v271, %v287
    %291 = vrot.lane.b32.xlu0 %v289, 32
    %v292 = vpop.permute.xlu0 %291
    %294 = vst.msk [vmem:[#allocation3 + $0x6] sm:$0x3] %vm84, %v292
    %v295 = vld [vmem:[%s0 + $0x8] sm:$0x3]
    %v296 = vpack.c.bf16 %v289, %v289
    %298 = vrot.lane.b32.xlu0 %v296, 32
    %v299 = vpop.permute.xlu0 %298
    %v301 = vsel %vm103, %v299, 0
    %303 = vmatpush.bf16.msra.mxu0 0
    %304 = vmatpush.bf16.msra.mxu0 0
    %305 = vmatpush.bf16.msra.mxu0 0
    %306 = vmatpush.bf16.msra.mxu0 0
    %307 = vmatpush.bf16.msra.mxu0 0
    %308 = vmatpush.bf16.msra.mxu0 0
    %309 = vmatpush.bf16.msra.mxu0 %v100
    %310 = vmatpush.bf16.msra.mxu0 %v99
    %311 = vmatmul.bf16.gmra.mxu0 %v301
    %v312 = vpop.f32.mrf.mxu0
    %v313 = vadd.f32 0.0, %v312
    %v314 = vpop.f32.mrf.mxu0
    %315 = vdwg.mxu0
    %v316 = vadd.f32 %v295, %v313
    %v317 = vxor.u32 %v316, 2147483648
    %v318 = vmul.f32 %v317, 1.442695
    %v319 = vpow.pop %v318
    %v320 = vadd.f32 %v319, 1.0
    %v321 = vrcp.pop %v320
    %v322 = vmul.f32 %v320, %v321
    %v323 = vsub.f32 1.0, %v322
    %v324 = vmul.f32 %v321, %v323
    %v325 = vadd.f32 %v321, %v324
    %vm326 = vweird.f32 %v320
    %vm327 = vweird.f32 %v321
    %vm328 = vmor %vm326, %vm327
    %v329 = vsel %vm328, %v321, %v325
    %v330 = vand.u32 2147483647, %v320
    %vm331 = vcmp.eq.f32.partialorder %v330, 8.507059e+37
    %v332 = vand.u32 %v320, 2147483648
    %v333 = vor.u32 1.1754944e-38, %v332
    %v334 = vsel %vm331, %v333, %v329
    %v335 = vmul.f32 1.0, %v334
    %v336 = vtanh.pop %v316
    %v337 = vmul.f32 %v335, %v283
    %339 = vrot.lane.b32.xlu0 %v336, 64
    %v340 = vpop.permute.xlu0 %339
    %v342 = vmul.f32 %v335, %v340
    %344 = vrot.lane.b32.xlu0 %v342, 32
    %v345 = vpop.permute.xlu0 %344
    %v347 = vadd.f32 %v337, %v345
    %v348 = vtanh.pop %v347
    %350 = vrot.lane.b32.xlu0 %v348, 64
    %v351 = vpop.permute.xlu0 %350
    %v353 = vmul.f32 %v335, %v351
    %355 = vrot.lane.b32.xlu0 %v353, 32
    %v356 = vpop.permute.xlu0 %355
    %358 = vst.msk [vmem:[#allocation3 + $0x8] sm:$0x3] %vm84, %v356
    %v359 = vld [vmem:[%s0 + $0xa] sm:$0x3]
    %v360 = vpack.c.bf16 %v353, %v353
    %362 = vrot.lane.b32.xlu0 %v360, 32
    %v363 = vpop.permute.xlu0 %362
    %v365 = vsel %vm103, %v363, 0
    %367 = vmatpush.bf16.msra.mxu0 0
    %368 = vmatpush.bf16.msra.mxu0 0
    %369 = vmatpush.bf16.msra.mxu0 0
    %370 = vmatpush.bf16.msra.mxu0 0
    %371 = vmatpush.bf16.msra.mxu0 0
    %372 = vmatpush.bf16.msra.mxu0 0
    %373 = vmatpush.bf16.msra.mxu0 %v100
    %374 = vmatpush.bf16.msra.mxu0 %v99
    %375 = vmatmul.bf16.gmra.mxu0 %v365
    %v376 = vpop.f32.mrf.mxu0
    %v377 = vadd.f32 0.0, %v376
    %v378 = vpop.f32.mrf.mxu0
    %379 = vdwg.mxu0
    %v380 = vadd.f32 %v359, %v377
    %v381 = vxor.u32 %v380, 2147483648
    %v382 = vmul.f32 %v381, 1.442695
    %v383 = vpow.pop %v382
    %v384 = vadd.f32 %v383, 1.0
    %v385 = vrcp.pop %v384
    %v386 = vmul.f32 %v384, %v385
    %v387 = vsub.f32 1.0, %v386
    %v388 = vmul.f32 %v385, %v387
    %v389 = vadd.f32 %v385, %v388
    %vm390 = vweird.f32 %v384
    %vm391 = vweird.f32 %v385
    %vm392 = vmor %vm390, %vm391
    %v393 = vsel %vm392, %v385, %v389
    %v394 = vand.u32 2147483647, %v384
    %vm395 = vcmp.eq.f32.partialorder %v394, 8.507059e+37
    %v396 = vand.u32 %v384, 2147483648
    %v397 = vor.u32 1.1754944e-38, %v396
    %v398 = vsel %vm395, %v397, %v393
    %v399 = vmul.f32 1.0, %v398
    %v400 = vtanh.pop %v380
    %v401 = vmul.f32 %v399, %v347
    %403 = vrot.lane.b32.xlu0 %v400, 64
    %v404 = vpop.permute.xlu0 %403
    %v406 = vmul.f32 %v399, %v404
    %408 = vrot.lane.b32.xlu0 %v406, 32
    %v409 = vpop.permute.xlu0 %408
    %v411 = vadd.f32 %v401, %v409
    %v412 = vtanh.pop %v411
    %414 = vrot.lane.b32.xlu0 %v412, 64
    %v415 = vpop.permute.xlu0 %414
    %v417 = vmul.f32 %v399, %v415
    %419 = vrot.lane.b32.xlu0 %v417, 32
    %v420 = vpop.permute.xlu0 %419
    %422 = vst.msk [vmem:[#allocation3 + $0xa] sm:$0x3] %vm84, %v420
    %v423 = vld [vmem:[%s0 + $0xc] sm:$0x3]
    %v424 = vpack.c.bf16 %v417, %v417
    %426 = vrot.lane.b32.xlu0 %v424, 32
    %v427 = vpop.permute.xlu0 %426
    %v429 = vsel %vm103, %v427, 0
    %431 = vmatpush.bf16.msra.mxu0 0
    %432 = vmatpush.bf16.msra.mxu0 0
    %433 = vmatpush.bf16.msra.mxu0 0
    %434 = vmatpush.bf16.msra.mxu0 0
    %435 = vmatpush.bf16.msra.mxu0 0
    %436 = vmatpush.bf16.msra.mxu0 0
    %437 = vmatpush.bf16.msra.mxu0 %v100
    %438 = vmatpush.bf16.msra.mxu0 %v99
    %439 = vmatmul.bf16.gmra.mxu0 %v429
    %v440 = vpop.f32.mrf.mxu0
    %v441 = vadd.f32 0.0, %v440
    %v442 = vpop.f32.mrf.mxu0
    %443 = vdwg.mxu0
    %v444 = vadd.f32 %v423, %v441
    %v445 = vxor.u32 %v444, 2147483648
    %v446 = vmul.f32 %v445, 1.442695
    %v447 = vpow.pop %v446
    %v448 = vadd.f32 %v447, 1.0
    %v449 = vrcp.pop %v448
    %v450 = vmul.f32 %v448, %v449
    %v451 = vsub.f32 1.0, %v450
    %v452 = vmul.f32 %v449, %v451
    %v453 = vadd.f32 %v449, %v452
    %vm454 = vweird.f32 %v448
    %vm455 = vweird.f32 %v449
    %vm456 = vmor %vm454, %vm455
    %v457 = vsel %vm456, %v449, %v453
    %v458 = vand.u32 2147483647, %v448
    %vm459 = vcmp.eq.f32.partialorder %v458, 8.507059e+37
    %v460 = vand.u32 %v448, 2147483648
    %v461 = vor.u32 1.1754944e-38, %v460
    %v462 = vsel %vm459, %v461, %v457
    %v463 = vmul.f32 1.0, %v462
    %v464 = vtanh.pop %v444
    %v465 = vmul.f32 %v463, %v411
    %467 = vrot.lane.b32.xlu0 %v464, 64
    %v468 = vpop.permute.xlu0 %467
    %v470 = vmul.f32 %v463, %v468
    %472 = vrot.lane.b32.xlu0 %v470, 32
    %v473 = vpop.permute.xlu0 %472
    %v475 = vadd.f32 %v465, %v473
    %v476 = vtanh.pop %v475
    %478 = vrot.lane.b32.xlu0 %v476, 64
    %v479 = vpop.permute.xlu0 %478
    %v481 = vmul.f32 %v463, %v479
    %483 = vrot.lane.b32.xlu0 %v481, 32
    %v484 = vpop.permute.xlu0 %483
    %486 = vst.msk [vmem:[#allocation3 + $0xc] sm:$0x3] %vm84, %v484
    %v487 = vld [vmem:[%s0 + $0xe] sm:$0x3]
    %v488 = vpack.c.bf16 %v481, %v481
    %490 = vrot.lane.b32.xlu0 %v488, 32
    %v491 = vpop.permute.xlu0 %490
    %v493 = vsel %vm103, %v491, 0
    %495 = vmatpush.bf16.msra.mxu0 0
    %496 = vmatpush.bf16.msra.mxu0 0
    %497 = vmatpush.bf16.msra.mxu0 0
    %498 = vmatpush.bf16.msra.mxu0 0
    %499 = vmatpush.bf16.msra.mxu0 0
    %500 = vmatpush.bf16.msra.mxu0 0
    %501 = vmatpush.bf16.msra.mxu0 %v100
    %502 = vmatpush.bf16.msra.mxu0 %v99
    %503 = vmatmul.bf16.gmra.mxu0 %v493
    %v504 = vpop.f32.mrf.mxu0
    %v505 = vadd.f32 0.0, %v504
    %v506 = vpop.f32.mrf.mxu0
    %507 = vdwg.mxu0
    %v508 = vadd.f32 %v487, %v505
    %v509 = vxor.u32 %v508, 2147483648
    %v510 = vmul.f32 %v509, 1.442695
    %v511 = vpow.pop %v510
    %v512 = vadd.f32 %v511, 1.0
    %v513 = vrcp.pop %v512
    %v514 = vmul.f32 %v512, %v513
    %v515 = vsub.f32 1.0, %v514
    %v516 = vmul.f32 %v513, %v515
    %v517 = vadd.f32 %v513, %v516
    %vm518 = vweird.f32 %v512
    %vm519 = vweird.f32 %v513
    %vm520 = vmor %vm518, %vm519
    %v521 = vsel %vm520, %v513, %v517
    %v522 = vand.u32 2147483647, %v512
    %vm523 = vcmp.eq.f32.partialorder %v522, 8.507059e+37
    %v524 = vand.u32 %v512, 2147483648
    %v525 = vor.u32 1.1754944e-38, %v524
    %v526 = vsel %vm523, %v525, %v521
    %v527 = vmul.f32 1.0, %v526
    %v528 = vtanh.pop %v508
    %v529 = vmul.f32 %v527, %v475
    %531 = vrot.lane.b32.xlu0 %v528, 64
    %v532 = vpop.permute.xlu0 %531
    %v534 = vmul.f32 %v527, %v532
    %536 = vrot.lane.b32.xlu0 %v534, 32
    %v537 = vpop.permute.xlu0 %536
    %v539 = vadd.f32 %v529, %v537
    %v540 = vtanh.pop %v539
    %542 = vrot.lane.b32.xlu0 %v540, 64
    %v543 = vpop.permute.xlu0 %542
    %v545 = vmul.f32 %v527, %v543
    %547 = vrot.lane.b32.xlu0 %v545, 32
    %v548 = vpop.permute.xlu0 %547
    %550 = vst.msk [vmem:[#allocation3 + $0xe] sm:$0x3] %vm84, %v548
    %v551 = vld [vmem:[#allocation3] sm:$0xff]
    %v552 = vld [vmem:[#allocation3 + $0x8] sm:$0xff]
    %v553 = vpack.c.bf16 %v552, %v551
    %v554 = vld [vmem:[%s2] sm:$0xf]
    %v555 = vld [vmem:[%s2 + $0x4] sm:$0xf]
    %v556 = vld [vmem:[%s2 + $0x8] sm:$0xf]
    %v557 = vld [vmem:[%s2 + $0xc] sm:$0xf]
    %v558 = vld [vmem:[%s4] sm:$0x1]
    %v560 = vperm.slane %v558, 0
    %v566 = vunpack.c.l.b16 %v554
    %v567 = vunpack.c.l.b16 %v555
    %v568 = vunpack.c.l.b16 %v556
    %v569 = vunpack.c.l.b16 %v557
    %v570 = vpack.c.b16 %v567, %v566
    %v571 = vpack.c.b16 %v569, %v568
    %v575 = vsel %vm103, %v553, 0
    %577 = vmatpush.bf16.msra.mxu0 0
    %578 = vmatpush.bf16.msra.mxu0 0
    %579 = vmatpush.bf16.msra.mxu0 0
    %580 = vmatpush.bf16.msra.mxu0 0
    %581 = vmatpush.bf16.msra.mxu0 0
    %582 = vmatpush.bf16.msra.mxu0 0
    %583 = vmatpush.bf16.msra.mxu0 %v571
    %584 = vmatpush.bf16.msra.mxu0 %v570
    %585 = vmatmul.bf16.gmra.mxu0 %v575
    %v586 = vpop.f32.mrf.mxu0
    %v587 = vadd.f32 %v560, %v586
    %v588 = vpop.f32.mrf.mxu0
    %v589 = vadd.f32 %v560, %v588
    %590 = vdwg.mxu0
    %591 = vst [vmem:[#allocation2] sm:$0xff] %v587
    %592 = vst [vmem:[#allocation2 + $0x8] sm:$0xff] %v589
    %v593 = vld [vmem:[#allocation4] sm:$0xf]
    %v594 = vld [vmem:[#allocation4 + $0x4] sm:$0xf]
    %v595 = vld [vmem:[#allocation4 + $0x8] sm:$0xf]
    %v596 = vld [vmem:[#allocation4 + $0xc] sm:$0xf]
    %v597 = vld [vmem:[#allocation2] sm:$0x3]
    %v598 = vxor.u32 %v597, 2147483648
    %v599 = vmul.f32 %v598, 1.442695
    %v600 = vpow.pop %v599
    %v601 = vadd.f32 %v600, 1.0
    %v602 = vrcp.pop %v601
    %v603 = vmul.f32 %v601, %v602
    %v604 = vsub.f32 1.0, %v603
    %v605 = vmul.f32 %v602, %v604
    %v606 = vadd.f32 %v602, %v605
    %vm607 = vweird.f32 %v601
    %vm608 = vweird.f32 %v602
    %vm609 = vmor %vm607, %vm608
    %v610 = vsel %vm609, %v602, %v606
    %v611 = vand.u32 2147483647, %v601
    %vm612 = vcmp.eq.f32.partialorder %v611, 8.507059e+37
    %v613 = vand.u32 %v601, 2147483648
    %v614 = vor.u32 1.1754944e-38, %v613
    %v615 = vsel %vm612, %v614, %v610
    %v616 = vmul.f32 1.0, %v615
    %v617 = vtanh.pop %v597
    %619 = vrot.lane.b32.xlu0 %v617, 64
    %v620 = vpop.permute.xlu0 %619
    %v622 = vmul.f32 %v616, %v620
    %v623 = vtanh.pop %v622
    %625 = vrot.lane.b32.xlu0 %v623, 96
    %v626 = vpop.permute.xlu0 %625
    %v628 = vmul.f32 %v616, %v626
    %v629 = vld [vmem:[#allocation2 + $0x2] sm:$0x3]
    %v630 = vpack.c.bf16 %v628, %v628
    %632 = vrot.lane.b32.xlu0 %v630, 32
    %v633 = vpop.permute.xlu0 %632
    %v638 = vunpack.c.l.b16 %v593
    %v639 = vunpack.c.l.b16 %v594
    %v640 = vunpack.c.l.b16 %v595
    %v641 = vunpack.c.l.b16 %v596
    %v642 = vpack.c.b16 %v639, %v638
    %v643 = vpack.c.b16 %v641, %v640
    %v647 = vsel %vm103, %v633, 0
    %649 = vmatpush.bf16.msra.mxu0 0
    %650 = vmatpush.bf16.msra.mxu0 0
    %651 = vmatpush.bf16.msra.mxu0 0
    %652 = vmatpush.bf16.msra.mxu0 0
    %653 = vmatpush.bf16.msra.mxu0 0
    %654 = vmatpush.bf16.msra.mxu0 0
    %655 = vmatpush.bf16.msra.mxu0 %v643
    %656 = vmatpush.bf16.msra.mxu0 %v642
    %657 = vmatmul.bf16.gmra.mxu0 %v647
    %v658 = vpop.f32.mrf.mxu0
    %v659 = vadd.f32 0.0, %v658
    %v660 = vpop.f32.mrf.mxu0
    %661 = vdwg.mxu0
    %v662 = vadd.f32 %v629, %v659
    %v663 = vxor.u32 %v662, 2147483648
    %v664 = vmul.f32 %v663, 1.442695
    %v665 = vpow.pop %v664
    %v666 = vadd.f32 %v665, 1.0
    %v667 = vrcp.pop %v666
    %v668 = vmul.f32 %v666, %v667
    %v669 = vsub.f32 1.0, %v668
    %v670 = vmul.f32 %v667, %v669
    %v671 = vadd.f32 %v667, %v670
    %vm672 = vweird.f32 %v666
    %vm673 = vweird.f32 %v667
    %vm674 = vmor %vm672, %vm673
    %v675 = vsel %vm674, %v667, %v671
    %v676 = vand.u32 2147483647, %v666
    %vm677 = vcmp.eq.f32.partialorder %v676, 8.507059e+37
    %v678 = vand.u32 %v666, 2147483648
    %v679 = vor.u32 1.1754944e-38, %v678
    %v680 = vsel %vm677, %v679, %v675
    %v681 = vmul.f32 1.0, %v680
    %v682 = vtanh.pop %v662
    %684 = vrot.lane.b32.xlu0 %v622, 32
    %v685 = vpop.permute.xlu0 %684
    %v687 = vmul.f32 %v681, %v685
    %689 = vrot.lane.b32.xlu0 %v682, 64
    %v690 = vpop.permute.xlu0 %689
    %v692 = vmul.f32 %v681, %v690
    %694 = vrot.lane.b32.xlu0 %v692, 32
    %v695 = vpop.permute.xlu0 %694
    %v697 = vadd.f32 %v687, %v695
    %v698 = vtanh.pop %v697
    %700 = vrot.lane.b32.xlu0 %v698, 64
    %v701 = vpop.permute.xlu0 %700
    %v703 = vmul.f32 %v681, %v701
    %v704 = vld [vmem:[#allocation2 + $0x4] sm:$0x3]
    %v705 = vpack.c.bf16 %v703, %v703
    %707 = vrot.lane.b32.xlu0 %v705, 32
    %v708 = vpop.permute.xlu0 %707
    %v710 = vsel %vm103, %v708, 0
    %712 = vmatpush.bf16.msra.mxu0 0
    %713 = vmatpush.bf16.msra.mxu0 0
    %714 = vmatpush.bf16.msra.mxu0 0
    %715 = vmatpush.bf16.msra.mxu0 0
    %716 = vmatpush.bf16.msra.mxu0 0
    %717 = vmatpush.bf16.msra.mxu0 0
    %718 = vmatpush.bf16.msra.mxu0 %v643
    %719 = vmatpush.bf16.msra.mxu0 %v642
    %720 = vmatmul.bf16.gmra.mxu0 %v710
    %v721 = vpop.f32.mrf.mxu0
    %v722 = vadd.f32 0.0, %v721
    %v723 = vpop.f32.mrf.mxu0
    %724 = vdwg.mxu0
    %v725 = vadd.f32 %v704, %v722
    %v726 = vxor.u32 %v725, 2147483648
    %v727 = vmul.f32 %v726, 1.442695
    %v728 = vpow.pop %v727
    %v729 = vadd.f32 %v728, 1.0
    %v730 = vrcp.pop %v729
    %v731 = vmul.f32 %v729, %v730
    %v732 = vsub.f32 1.0, %v731
    %v733 = vmul.f32 %v730, %v732
    %v734 = vadd.f32 %v730, %v733
    %vm735 = vweird.f32 %v729
    %vm736 = vweird.f32 %v730
    %vm737 = vmor %vm735, %vm736
    %v738 = vsel %vm737, %v730, %v734
    %v739 = vand.u32 2147483647, %v729
    %vm740 = vcmp.eq.f32.partialorder %v739, 8.507059e+37
    %v741 = vand.u32 %v729, 2147483648
    %v742 = vor.u32 1.1754944e-38, %v741
    %v743 = vsel %vm740, %v742, %v738
    %v744 = vmul.f32 1.0, %v743
    %v745 = vtanh.pop %v725
    %v746 = vmul.f32 %v744, %v697
    %748 = vrot.lane.b32.xlu0 %v745, 64
    %v749 = vpop.permute.xlu0 %748
    %v751 = vmul.f32 %v744, %v749
    %753 = vrot.lane.b32.xlu0 %v751, 32
    %v754 = vpop.permute.xlu0 %753
    %v756 = vadd.f32 %v746, %v754
    %v757 = vtanh.pop %v756
    %759 = vrot.lane.b32.xlu0 %v757, 64
    %v760 = vpop.permute.xlu0 %759
    %v762 = vmul.f32 %v744, %v760
    %v763 = vld [vmem:[#allocation2 + $0x6] sm:$0x3]
    %v764 = vpack.c.bf16 %v762, %v762
    %766 = vrot.lane.b32.xlu0 %v764, 32
    %v767 = vpop.permute.xlu0 %766
    %v769 = vsel %vm103, %v767, 0
    %771 = vmatpush.bf16.msra.mxu0 0
    %772 = vmatpush.bf16.msra.mxu0 0
    %773 = vmatpush.bf16.msra.mxu0 0
    %774 = vmatpush.bf16.msra.mxu0 0
    %775 = vmatpush.bf16.msra.mxu0 0
    %776 = vmatpush.bf16.msra.mxu0 0
    %777 = vmatpush.bf16.msra.mxu0 %v643
    %778 = vmatpush.bf16.msra.mxu0 %v642
    %779 = vmatmul.bf16.gmra.mxu0 %v769
    %v780 = vpop.f32.mrf.mxu0
    %v781 = vadd.f32 0.0, %v780
    %v782 = vpop.f32.mrf.mxu0
    %783 = vdwg.mxu0
    %v784 = vadd.f32 %v763, %v781
    %v785 = vxor.u32 %v784, 2147483648
    %v786 = vmul.f32 %v785, 1.442695
    %v787 = vpow.pop %v786
    %v788 = vadd.f32 %v787, 1.0
    %v789 = vrcp.pop %v788
    %v790 = vmul.f32 %v788, %v789
    %v791 = vsub.f32 1.0, %v790
    %v792 = vmul.f32 %v789, %v791
    %v793 = vadd.f32 %v789, %v792
    %vm794 = vweird.f32 %v788
    %vm795 = vweird.f32 %v789
    %vm796 = vmor %vm794, %vm795
    %v797 = vsel %vm796, %v789, %v793
    %v798 = vand.u32 2147483647, %v788
    %vm799 = vcmp.eq.f32.partialorder %v798, 8.507059e+37
    %v800 = vand.u32 %v788, 2147483648
    %v801 = vor.u32 1.1754944e-38, %v800
    %v802 = vsel %vm799, %v801, %v797
    %v803 = vmul.f32 1.0, %v802
    %v804 = vtanh.pop %v784
    %v805 = vmul.f32 %v803, %v756
    %807 = vrot.lane.b32.xlu0 %v804, 64
    %v808 = vpop.permute.xlu0 %807
    %v810 = vmul.f32 %v803, %v808
    %812 = vrot.lane.b32.xlu0 %v810, 32
    %v813 = vpop.permute.xlu0 %812
    %v815 = vadd.f32 %v805, %v813
    %v816 = vtanh.pop %v815
    %818 = vrot.lane.b32.xlu0 %v816, 64
    %v819 = vpop.permute.xlu0 %818
    %v821 = vmul.f32 %v803, %v819
    %v822 = vld [vmem:[#allocation2 + $0x8] sm:$0x3]
    %v823 = vpack.c.bf16 %v821, %v821
    %825 = vrot.lane.b32.xlu0 %v823, 32
    %v826 = vpop.permute.xlu0 %825
    %v828 = vsel %vm103, %v826, 0
    %830 = vmatpush.bf16.msra.mxu0 0
    %831 = vmatpush.bf16.msra.mxu0 0
    %832 = vmatpush.bf16.msra.mxu0 0
    %833 = vmatpush.bf16.msra.mxu0 0
    %834 = vmatpush.bf16.msra.mxu0 0
    %835 = vmatpush.bf16.msra.mxu0 0
    %836 = vmatpush.bf16.msra.mxu0 %v643
    %837 = vmatpush.bf16.msra.mxu0 %v642
    %838 = vmatmul.bf16.gmra.mxu0 %v828
    %v839 = vpop.f32.mrf.mxu0
    %v840 = vadd.f32 0.0, %v839
    %v841 = vpop.f32.mrf.mxu0
    %842 = vdwg.mxu0
    %v843 = vadd.f32 %v822, %v840
    %v844 = vxor.u32 %v843, 2147483648
    %v845 = vmul.f32 %v844, 1.442695
    %v846 = vpow.pop %v845
    %v847 = vadd.f32 %v846, 1.0
    %v848 = vrcp.pop %v847
    %v849 = vmul.f32 %v847, %v848
    %v850 = vsub.f32 1.0, %v849
    %v851 = vmul.f32 %v848, %v850
    %v852 = vadd.f32 %v848, %v851
    %vm853 = vweird.f32 %v847
    %vm854 = vweird.f32 %v848
    %vm855 = vmor %vm853, %vm854
    %v856 = vsel %vm855, %v848, %v852
    %v857 = vand.u32 2147483647, %v847
    %vm858 = vcmp.eq.f32.partialorder %v857, 8.507059e+37
    %v859 = vand.u32 %v847, 2147483648
    %v860 = vor.u32 1.1754944e-38, %v859
    %v861 = vsel %vm858, %v860, %v856
    %v862 = vmul.f32 1.0, %v861
    %v863 = vtanh.pop %v843
    %v864 = vmul.f32 %v862, %v815
    %866 = vrot.lane.b32.xlu0 %v863, 64
    %v867 = vpop.permute.xlu0 %866
    %v869 = vmul.f32 %v862, %v867
    %871 = vrot.lane.b32.xlu0 %v869, 32
    %v872 = vpop.permute.xlu0 %871
    %v874 = vadd.f32 %v864, %v872
    %v875 = vtanh.pop %v874
    %877 = vrot.lane.b32.xlu0 %v875, 64
    %v878 = vpop.permute.xlu0 %877
    %v880 = vmul.f32 %v862, %v878
    %v881 = vld [vmem:[#allocation2 + $0xa] sm:$0x3]
    %v882 = vpack.c.bf16 %v880, %v880
    %884 = vrot.lane.b32.xlu0 %v882, 32
    %v885 = vpop.permute.xlu0 %884
    %v887 = vsel %vm103, %v885, 0
    %889 = vmatpush.bf16.msra.mxu0 0
    %890 = vmatpush.bf16.msra.mxu0 0
    %891 = vmatpush.bf16.msra.mxu0 0
    %892 = vmatpush.bf16.msra.mxu0 0
    %893 = vmatpush.bf16.msra.mxu0 0
    %894 = vmatpush.bf16.msra.mxu0 0
    %895 = vmatpush.bf16.msra.mxu0 %v643
    %896 = vmatpush.bf16.msra.mxu0 %v642
    %897 = vmatmul.bf16.gmra.mxu0 %v887
    %v898 = vpop.f32.mrf.mxu0
    %v899 = vadd.f32 0.0, %v898
    %v900 = vpop.f32.mrf.mxu0
    %901 = vdwg.mxu0
    %v902 = vadd.f32 %v881, %v899
    %v903 = vxor.u32 %v902, 2147483648
    %v904 = vmul.f32 %v903, 1.442695
    %v905 = vpow.pop %v904
    %v906 = vadd.f32 %v905, 1.0
    %v907 = vrcp.pop %v906
    %v908 = vmul.f32 %v906, %v907
    %v909 = vsub.f32 1.0, %v908
    %v910 = vmul.f32 %v907, %v909
    %v911 = vadd.f32 %v907, %v910
    %vm912 = vweird.f32 %v906
    %vm913 = vweird.f32 %v907
    %vm914 = vmor %vm912, %vm913
    %v915 = vsel %vm914, %v907, %v911
    %v916 = vand.u32 2147483647, %v906
    %vm917 = vcmp.eq.f32.partialorder %v916, 8.507059e+37
    %v918 = vand.u32 %v906, 2147483648
    %v919 = vor.u32 1.1754944e-38, %v918
    %v920 = vsel %vm917, %v919, %v915
    %v921 = vmul.f32 1.0, %v920
    %v922 = vtanh.pop %v902
    %v923 = vmul.f32 %v921, %v874
    %925 = vrot.lane.b32.xlu0 %v922, 64
    %v926 = vpop.permute.xlu0 %925
    %v928 = vmul.f32 %v921, %v926
    %930 = vrot.lane.b32.xlu0 %v928, 32
    %v931 = vpop.permute.xlu0 %930
    %v933 = vadd.f32 %v923, %v931
    %v934 = vtanh.pop %v933
    %936 = vrot.lane.b32.xlu0 %v934, 64
    %v937 = vpop.permute.xlu0 %936
    %v939 = vmul.f32 %v921, %v937
    %v940 = vld [vmem:[#allocation2 + $0xc] sm:$0x3]
    %v941 = vpack.c.bf16 %v939, %v939
    %943 = vrot.lane.b32.xlu0 %v941, 32
    %v944 = vpop.permute.xlu0 %943
    %v946 = vsel %vm103, %v944, 0
    %948 = vmatpush.bf16.msra.mxu0 0
    %949 = vmatpush.bf16.msra.mxu0 0
    %950 = vmatpush.bf16.msra.mxu0 0
    %951 = vmatpush.bf16.msra.mxu0 0
    %952 = vmatpush.bf16.msra.mxu0 0
    %953 = vmatpush.bf16.msra.mxu0 0
    %954 = vmatpush.bf16.msra.mxu0 %v643
    %955 = vmatpush.bf16.msra.mxu0 %v642
    %956 = vmatmul.bf16.gmra.mxu0 %v946
    %v957 = vpop.f32.mrf.mxu0
    %v958 = vadd.f32 0.0, %v957
    %v959 = vpop.f32.mrf.mxu0
    %960 = vdwg.mxu0
    %v961 = vadd.f32 %v940, %v958
    %v962 = vxor.u32 %v961, 2147483648
    %v963 = vmul.f32 %v962, 1.442695
    %v964 = vpow.pop %v963
    %v965 = vadd.f32 %v964, 1.0
    %v966 = vrcp.pop %v965
    %v967 = vmul.f32 %v965, %v966
    %v968 = vsub.f32 1.0, %v967
    %v969 = vmul.f32 %v966, %v968
    %v970 = vadd.f32 %v966, %v969
    %vm971 = vweird.f32 %v965
    %vm972 = vweird.f32 %v966
    %vm973 = vmor %vm971, %vm972
    %v974 = vsel %vm973, %v966, %v970
    %v975 = vand.u32 2147483647, %v965
    %vm976 = vcmp.eq.f32.partialorder %v975, 8.507059e+37
    %v977 = vand.u32 %v965, 2147483648
    %v978 = vor.u32 1.1754944e-38, %v977
    %v979 = vsel %vm976, %v978, %v974
    %v980 = vmul.f32 1.0, %v979
    %v981 = vtanh.pop %v961
    %v982 = vmul.f32 %v980, %v933
    %984 = vrot.lane.b32.xlu0 %v981, 64
    %v985 = vpop.permute.xlu0 %984
    %v987 = vmul.f32 %v980, %v985
    %989 = vrot.lane.b32.xlu0 %v987, 32
    %v990 = vpop.permute.xlu0 %989
    %v992 = vadd.f32 %v982, %v990
    %v993 = vtanh.pop %v992
    %995 = vrot.lane.b32.xlu0 %v993, 64
    %v996 = vpop.permute.xlu0 %995
    %v998 = vmul.f32 %v980, %v996
    %v999 = vld [vmem:[#allocation2 + $0xe] sm:$0x3]
    %v1000 = vpack.c.bf16 %v998, %v998
    %1002 = vrot.lane.b32.xlu0 %v1000, 32
    %v1003 = vpop.permute.xlu0 %1002
    %v1005 = vsel %vm103, %v1003, 0
    %1007 = vmatpush.bf16.msra.mxu0 0
    %1008 = vmatpush.bf16.msra.mxu0 0
    %1009 = vmatpush.bf16.msra.mxu0 0
    %1010 = vmatpush.bf16.msra.mxu0 0
    %1011 = vmatpush.bf16.msra.mxu0 0
    %1012 = vmatpush.bf16.msra.mxu0 0
    %1013 = vmatpush.bf16.msra.mxu0 %v643
    %1014 = vmatpush.bf16.msra.mxu0 %v642
    %1015 = vmatmul.bf16.gmra.mxu0 %v1005
    %v1016 = vpop.f32.mrf.mxu0
    %v1017 = vadd.f32 0.0, %v1016
    %v1018 = vpop.f32.mrf.mxu0
    %1019 = vdwg.mxu0
    %v1020 = vadd.f32 %v999, %v1017
    %v1021 = vxor.u32 %v1020, 2147483648
    %v1022 = vmul.f32 %v1021, 1.442695
    %v1023 = vpow.pop %v1022
    %v1024 = vadd.f32 %v1023, 1.0
    %v1025 = vrcp.pop %v1024
    %v1026 = vmul.f32 %v1024, %v1025
    %v1027 = vsub.f32 1.0, %v1026
    %v1028 = vmul.f32 %v1025, %v1027
    %v1029 = vadd.f32 %v1025, %v1028
    %vm1030 = vweird.f32 %v1024
    %vm1031 = vweird.f32 %v1025
    %vm1032 = vmor %vm1030, %vm1031
    %v1033 = vsel %vm1032, %v1025, %v1029
    %v1034 = vand.u32 2147483647, %v1024
    %vm1035 = vcmp.eq.f32.partialorder %v1034, 8.507059e+37
    %v1036 = vand.u32 %v1024, 2147483648
    %v1037 = vor.u32 1.1754944e-38, %v1036
    %v1038 = vsel %vm1035, %v1037, %v1033
    %v1039 = vmul.f32 1.0, %v1038
    %v1040 = vtanh.pop %v1020
    %v1041 = vmul.f32 %v1039, %v992
    %1043 = vrot.lane.b32.xlu0 %v1040, 64
    %v1044 = vpop.permute.xlu0 %1043
    %v1046 = vmul.f32 %v1039, %v1044
    %1048 = vrot.lane.b32.xlu0 %v1046, 32
    %v1049 = vpop.permute.xlu0 %1048
    %v1051 = vadd.f32 %v1041, %v1049
    %v1052 = vtanh.pop %v1051
    %1054 = vrot.lane.b32.xlu0 %v1052, 64
    %v1055 = vpop.permute.xlu0 %1054
    %v1057 = vmul.f32 %v1039, %v1055
    %v1058 = vld [vmem:[%s5] sm:$0xff]
    %v1059 = vld [vmem:[%s5 + $0x8] sm:$0xff]
    %v1060 = vld [vmem:[%s5 + $0x10] sm:$0xff]
    %v1061 = vld [vmem:[%s5 + $0x18] sm:$0xff]
    %v1062 = vld [vmem:[%s6] sm:$0x1]
    %v1064 = vperm.slane %v1062, 0
    %1067 = vrot.lane.b32.xlu0 %v1057, 32
    %v1068 = vpop.permute.xlu0 %1067
    %v1069 = vsel %vm103, %v1068, 0
    %1071 = vmatpush.msra.mxu0 0.0
    %1072 = vmatpush.msra.mxu0 0.0
    %1073 = vmatpush.msra.mxu0 0.0
    %1074 = vmatpush.msra.mxu0 0.0
    %1075 = vmatpush.msra.mxu0 0.0
    %1076 = vmatpush.msra.mxu0 0.0
    %1077 = vmatpush.msra.mxu0 0.0
    %1078 = vmatpush.msra.mxu0 0.0
    %1079 = vmatpush.msra.mxu0 0.0
    %1080 = vmatpush.msra.mxu0 0.0
    %1081 = vmatpush.msra.mxu0 0.0
    %1082 = vmatpush.msra.mxu0 0.0
    %1083 = vmatpush.msra.mxu0 %v1061
    %1084 = vmatpush.msra.mxu0 %v1060
    %1085 = vmatpush.msra.mxu0 %v1059
    %1086 = vmatpush.msra.mxu0 %v1058
    %1087 = vmatmul.f32.gmra.mxu0 %v1069
    %v1088 = vpop.f32.mrf.mxu0
    %v1089 = vadd.f32 %v1064, %v1088
    %1090 = vdwg.mxu0
    %vm1091 = vcmask 74752
    %1092 = vst.msk [vmem:[#allocation7] sm:$0x3] %vm1091, %v1089
    // Predicated region
    $region34: #{tpu_custom_call.1} parent=1 // pred_check
      _
    $region35: #{tpu_custom_call.1} parent=1 // pred_check_branch
      %1094 = sbr.rel (0) target = $region37
    $region36: #{tpu_custom_call.1} parent=1 // pred_region
      %1096 = vsyncadd [#allocation6], 0
      %s1098 = sshll.u32 [#allocation7], 4
      %s1099 = int_to_ptr.vmem [resolvable:$true] %s1098
      %s1100 = sshll.u32 %s7, 4
      %s1101 = int_to_ptr.hbm [resolvable:$true] %s1100
      %1103 = dma.vmem_to_hbm [thread:$0]  %s1099, 32, %s1101, [#allocation6]
    $region37: #{tpu_custom_call.1} parent=1 // pred_fallthru
      _
    // Predicated region
    $region38: #{tpu_custom_call.1} parent=1 // pred_check
      _
    $region39: #{tpu_custom_call.1} parent=1 // pred_check_branch
      %1105 = sbr.rel (0) target = $region41
    $region40: #{tpu_custom_call.1} parent=1 // pred_region
      %1107 = dma.done [#allocation6], 32
    $region41: #{tpu_custom_call.1} parent=1 // pred_fallthru
      _
    %1108 = vsyncpa [#allocation5], 1
    %1109 = vsyncpa [#allocation6], 1

</llo_original>
